<compile_context>
chip_gen: v7x
topology: tpu7x:2x2x1
jax: 0.10.0
libtpu: 0.0.40
codegen_flags: <defaults>
</compile_context>

<pallas_src>
import functools

import jax
import jax.numpy as jnp
from jax.experimental import pallas as pl
from jax.experimental.pallas import tpu as pltpu


def _round_up(x, m):
    return ((x + m - 1) // m) * m


def _default_tanh_dtype():
    # bf16 tanh ~doubles packed EUP throughput on v6e/v7x; v5e (and older) has
    # no bf16 EUP/VPU path, so keep f32 there (review items for v5e/v6e/v7x).
    try:
        kind = jax.devices()[0].device_kind.lower()
    except Exception:  # pragma: no cover - defensive
        return jnp.float32
    return jnp.bfloat16 if ("v6" in kind or "v7" in kind) else jnp.float32


def _const_spec(shape):
    """Grid-invariant (weight) block: single-buffer it to save VMEM."""
    idx = lambda i, _n=len(shape): (0,) * _n
    try:
        return pl.BlockSpec(shape, idx, pipeline_mode=pl.Buffered(1))
    except (TypeError, AttributeError):
        # Older jax without pipeline_mode/Buffered: fall back to default spec.
        return pl.BlockSpec(shape, idx)


def copynet_kernel(src_ref, tgt_ref, ws_ref, wt_ref, wp_ref, wr_ref, br_ref,
                   bp_ref, genp_ref, logits_ref, *, t_pad, s_pad, tanh_dtype):
    bt = genp_ref.shape[0]          # batch elements per grid step

    # Activations arrive flattened, padded and already bf16 (wrapper-side cast).
    src = src_ref[...]              # (bt*s_pad, E) bf16
    tgt = tgt_ref[...]              # (bt*t_pad, E) bf16

    # Linear layers: lane-dense 2-D MXU matmuls, f32 accumulation.
    src_lin = jnp.dot(src, ws_ref[...], preferred_element_type=jnp.float32)   # (bt*s_pad, E)
    tgt_lin = jnp.dot(tgt, wt_ref[...], preferred_element_type=jnp.float32)   # (bt*t_pad, E)

    # LinearProb logits, lane-padded to 128 columns -> unmasked store.
    # The 4-wide softmax itself is done in the wrapper (review item).
    logits_ref[...] = (jnp.dot(tgt, wp_ref[...], preferred_element_type=jnp.float32)
                       + bp_ref[...]).astype(logits_ref.dtype)

    wr = wr_ref[...]                # (1, E) bf16  (LinearRes weight row)
    br = br_ref[...]                # (1, 1) f32   (LinearRes bias)

    rows = []
    for b in range(bt):             # bt is small & static
        sl = src_lin[b * s_pad:(b + 1) * s_pad, :]                 # (s_pad, E)
        # Pair slab (t_pad*s_pad, E): row t*s_pad + s = tgt_lin[t] + src_lin[s].
        # Built from well-supported (1, E)-row sublane-broadcast adds; the
        # expensive tanh / contraction below are batched over the whole slab.
        pieces = [sl + tgt_lin[b * t_pad + t:b * t_pad + t + 1, :]
                  for t in range(t_pad)]
        pair = jnp.concatenate(pieces, axis=0)                     # (t_pad*s_pad, E)

        h = jnp.tanh(pair.astype(tanh_dtype))                      # ONE EUP pass per b

        # ONE bf16 MXU contraction per b -> lane-dense (1, t_pad*s_pad) row.
        row = jnp.einsum('oe,ne->on', wr, h.astype(jnp.bfloat16),
                         preferred_element_type=jnp.float32)
        rows.append((row + br)[:, None, :])                        # (1, 1, t_pad*s_pad)

    # Single lane-dense slab store per grid step.
    genp_ref[...] = jnp.concatenate(rows, axis=0).astype(genp_ref.dtype)


def copynet_forward(params, source, target, *, batch_tile=8, tanh_dtype=None):
    """Returns (genP [B,T,S], prob [B,T,4]) exactly like CopyNet.forward."""
    B, S, E = source.shape
    T = target.shape[1]

    S_pad = _round_up(S, 128)       # lane-dense genP stores
    T_pad = _round_up(T, 8)         # sublane alignment
    PL = 128                        # lane-padded prob-logits width

    if tanh_dtype is None:
        tanh_dtype = _default_tanh_dtype()

    # Batch tile: largest divisor of B that is <= batch_tile, preferring >= 2
    # grid steps so the "parallel" batch axis can shard across v7x's 2 TCs.
    bt = min(B, batch_tile)
    if B >= 2:
        bt = min(bt, B // 2)
    while B % bt:
        bt -= 1
    grid = (B // bt,)

    f32, bf16 = jnp.float32, jnp.bfloat16

    # Pad + flatten + bf16-cast the activations here (halves DMA bytes, no
    # in-kernel casts, no in-kernel reshapes).
    src2 = jnp.pad(source, ((0, 0), (0, S_pad - S), (0, 0))).astype(bf16)
    src2 = src2.reshape(B * S_pad, E)
    tgt2 = jnp.pad(target, ((0, 0), (0, T_pad - T), (0, 0))).astype(bf16)
    tgt2 = tgt2.reshape(B * T_pad, E)

    ws = params["w_source"].astype(bf16)                                   # (E, E)
    wt = params["w_target"].astype(bf16)                                   # (E, E)
    wp = jnp.zeros((E, PL), f32).at[:, :4].set(params["w_prob"]).astype(bf16)  # (E, 128)
    bp = jnp.zeros((1, PL), f32).at[:, :4].set(params["b_prob"][None, :])      # (1, 128)
    wr = params["w_res"].reshape(1, E).astype(bf16)                        # (1, E)
    br = params["b_res"].reshape(1, 1).astype(f32)                         # (1, 1)

    kernel = functools.partial(copynet_kernel, t_pad=T_pad, s_pad=S_pad,
                               tanh_dtype=tanh_dtype)

    genp_flat, logits = pl.pallas_call(
        kernel,
        out_shape=(jax.ShapeDtypeStruct((B, 1, T_pad * S_pad), f32),
                   jax.ShapeDtypeStruct((B * T_pad, PL), f32)),
        grid=grid,
        in_specs=[
            pl.BlockSpec((bt * S_pad, E), lambda i: (i, 0)),   # source (flat, bf16)
            pl.BlockSpec((bt * T_pad, E), lambda i: (i, 0)),   # target (flat, bf16)
            _const_spec((E, E)),                               # W_source
            _const_spec((E, E)),                               # W_target
            _const_spec((E, PL)),                              # W_prob (lane-padded)
            _const_spec((1, E)),                               # W_res row
            _const_spec((1, 1)),                               # b_res
            _const_spec((1, PL)),                              # b_prob (lane-padded)
        ],
        out_specs=(pl.BlockSpec((bt, 1, T_pad * S_pad), lambda i: (i, 0, 0)),
                   pl.BlockSpec((bt * T_pad, PL), lambda i: (i, 0))),
        compiler_params=pltpu.CompilerParams(
            dimension_semantics=("parallel",),
            vmem_limit_bytes=48 * 1024 * 1024),
    )(src2, tgt2, ws, wt, wp, wr, br, bp)

    genp = genp_flat.reshape(B, T_pad, S_pad)[:, :T, :S]
    logits4 = logits.reshape(B, T_pad, PL)[:, :T, :4]
    prob = jax.nn.softmax(logits4, axis=-1)     # 4-wide softmax belongs in the wrapper
    return genp, prob


def copynet_reference(params, source, target):
    """Pure-JAX f32 reference mirroring the PyTorch forward."""
    src_lin = source @ params["w_source"]                        # [B, S, E]
    tgt_lin = target @ params["w_target"]                        # [B, T, E]
    pair = jnp.tanh(src_lin[:, None, :, :] + tgt_lin[:, :, None, :])   # [B,T,S,E]
    genp = jnp.einsum('btse,e->bts', pair, params["w_res"][:, 0]) + params["b_res"][0]
    logits = target @ params["w_prob"] + params["b_prob"]
    prob = jax.nn.softmax(logits, axis=-1)
    return genp, prob


def init_params(key, E):
    k1, k2, k3, k4, k5, k6 = jax.random.split(key, 6)

    def w(k, shape, scale=0.02):
        return scale * jax.random.normal(k, shape, dtype=jnp.float32)

    return {
        "w_source": w(k1, (E, E)),    # LinearSource (no bias), stored as [in, out]
        "w_target": w(k2, (E, E)),    # LinearTarget (no bias)
        "w_res":    w(k3, (E, 1)),    # LinearRes weight
        "b_res":    w(k4, (1,)),      # LinearRes bias
        "w_prob":   w(k5, (E, 4)),    # LinearProb weight
        "b_prob":   w(k6, (4,)),      # LinearProb bias
    }


if __name__ == "__main__":
    B, S, T, E = 2, 16, 8, 32         # batch, source len, target len, embedding_size

    key = jax.random.PRNGKey(0)
    ks, kt, kp = jax.random.split(key, 3)
    source = jax.random.normal(ks, (B, S, E), dtype=jnp.float32)
    target = jax.random.normal(kt, (B, T, E), dtype=jnp.float32)
    params = init_params(kp, E)

    genp, prob = copynet_forward(params, source, target)
    genp, prob = jax.block_until_ready((genp, prob))

    assert genp.shape == (B, T, S) and genp.dtype == jnp.float32
    assert prob.shape == (B, T, 4) and prob.dtype == jnp.float32
    assert bool(jnp.all(jnp.isfinite(genp))) and bool(jnp.all(jnp.isfinite(prob)))

    genp_ref, prob_ref = copynet_reference(params, source, target)
    assert bool(jnp.allclose(genp, genp_ref, atol=5e-3, rtol=5e-2)), \
        float(jnp.max(jnp.abs(genp - genp_ref)))
    assert bool(jnp.allclose(prob, prob_ref, atol=5e-3, rtol=5e-2))
    print("KERNEL_OK")
</pallas_src>

<mosaic_0001>
module attributes {stable_mosaic.version = 11 : i64} {
  func.func @copynet_kernel(%arg0: i32, %arg1: memref<128x32xbf16, #tpu.memory_space<vmem>>, %arg2: memref<8x32xbf16, #tpu.memory_space<vmem>>, %arg3: memref<32x32xbf16, #tpu.memory_space<vmem>>, %arg4: memref<32x32xbf16, #tpu.memory_space<vmem>>, %arg5: memref<32x128xbf16, #tpu.memory_space<vmem>>, %arg6: memref<1x32xbf16, #tpu.memory_space<vmem>>, %arg7: memref<1x1xf32, #tpu.memory_space<vmem>>, %arg8: memref<1x128xf32, #tpu.memory_space<vmem>>, %arg9: memref<1x1x1024xf32, #tpu.memory_space<vmem>>, %arg10: memref<8x128xf32, #tpu.memory_space<vmem>>) attributes {dimension_semantics = [#tpu.dimension_semantics<parallel>], iteration_bounds = array<i64: 2>, scalar_prefetch = 0 : i64, scratch_operands = 0 : i64, tpu.core_type = #tpu.core_type<tc>, window_params = [{transform_indices = @transform_0, window_bounds = array<i64: 128, 32>}, {transform_indices = @transform_1, window_bounds = array<i64: 8, 32>}, {pipeline_mode = #tpu.pipeline_mode<synchronous>, transform_indices = @transform_2, window_bounds = array<i64: 32, 32>}, {pipeline_mode = #tpu.pipeline_mode<synchronous>, transform_indices = @transform_3, window_bounds = array<i64: 32, 32>}, {pipeline_mode = #tpu.pipeline_mode<synchronous>, transform_indices = @transform_4, window_bounds = array<i64: 32, 128>}, {pipeline_mode = #tpu.pipeline_mode<synchronous>, transform_indices = @transform_5, window_bounds = array<i64: 1, 32>}, {pipeline_mode = #tpu.pipeline_mode<synchronous>, transform_indices = @transform_6, window_bounds = array<i64: 1, 1>}, {pipeline_mode = #tpu.pipeline_mode<synchronous>, transform_indices = @transform_7, window_bounds = array<i64: 1, 128>}, {transform_indices = @transform_8, window_bounds = array<i64: 1, 1, 1024>}, {transform_indices = @transform_9, window_bounds = array<i64: 8, 128>}]} {
    %c0 = arith.constant 0 : index
    %c0_0 = arith.constant 0 : index
    %0 = vector.load %arg1[%c0, %c0_0] : memref<128x32xbf16, #tpu.memory_space<vmem>>, vector<128x32xbf16>
    %c0_1 = arith.constant 0 : index
    %c0_2 = arith.constant 0 : index
    %1 = vector.load %arg2[%c0_1, %c0_2] : memref<8x32xbf16, #tpu.memory_space<vmem>>, vector<8x32xbf16>
    %c0_3 = arith.constant 0 : index
    %c0_4 = arith.constant 0 : index
    %2 = vector.load %arg3[%c0_3, %c0_4] : memref<32x32xbf16, #tpu.memory_space<vmem>>, vector<32x32xbf16>
    %cst = arith.constant dense<0.000000e+00> : vector<128x32xf32>
    %3 = tpu.matmul %0, %2, %cst {dimension_numbers = #tpu.dot_dimension_numbers<[1], [0], [0], [1], [0, 0, 1, 1], [], []>} : vector<128x32xbf16>, vector<32x32xbf16>, vector<128x32xf32> -> vector<128x32xf32>
    %c0_5 = arith.constant 0 : index
    %c0_6 = arith.constant 0 : index
    %4 = vector.load %arg4[%c0_5, %c0_6] : memref<32x32xbf16, #tpu.memory_space<vmem>>, vector<32x32xbf16>
    %cst_7 = arith.constant dense<0.000000e+00> : vector<8x32xf32>
    %5 = tpu.matmul %1, %4, %cst_7 {dimension_numbers = #tpu.dot_dimension_numbers<[1], [0], [0], [1], [0, 0, 1, 1], [], []>} : vector<8x32xbf16>, vector<32x32xbf16>, vector<8x32xf32> -> vector<8x32xf32>
    %c0_8 = arith.constant 0 : index
    %c0_9 = arith.constant 0 : index
    %6 = vector.load %arg5[%c0_8, %c0_9] : memref<32x128xbf16, #tpu.memory_space<vmem>>, vector<32x128xbf16>
    %cst_10 = arith.constant dense<0.000000e+00> : vector<8x128xf32>
    %7 = tpu.matmul %1, %6, %cst_10 {dimension_numbers = #tpu.dot_dimension_numbers<[1], [0], [0], [1], [0, 0, 1, 1], [], []>} : vector<8x32xbf16>, vector<32x128xbf16>, vector<8x128xf32> -> vector<8x128xf32>
    %c0_11 = arith.constant 0 : index
    %c0_12 = arith.constant 0 : index
    %8 = vector.load %arg8[%c0_11, %c0_12] : memref<1x128xf32, #tpu.memory_space<vmem>>, vector<1x128xf32>
    %9 = vector.broadcast %8 : vector<1x128xf32> to vector<8x128xf32>
    %10 = arith.addf %7, %9 : vector<8x128xf32>
    %c0_13 = arith.constant 0 : index
    %c0_14 = arith.constant 0 : index
    %11 = vector.load %arg10[%c0_13, %c0_14] : memref<8x128xf32, #tpu.memory_space<vmem>>, vector<8x128xf32>
    tpu.vector_store %arg10[%c0_13, %c0_14], %10 {strides = array<i32>} : memref<8x128xf32, #tpu.memory_space<vmem>>, vector<8x128xf32>,
    %c0_15 = arith.constant 0 : index
    %c0_16 = arith.constant 0 : index
    %12 = vector.load %arg6[%c0_15, %c0_16] : memref<1x32xbf16, #tpu.memory_space<vmem>>, vector<1x32xbf16>
    %c0_17 = arith.constant 0 : index
    %c0_18 = arith.constant 0 : index
    %13 = vector.load %arg7[%c0_17, %c0_18] : memref<1x1xf32, #tpu.memory_space<vmem>>, vector<1x1xf32>
    %14 = vector.extract_strided_slice %5 {offsets = [0, 0], sizes = [1, 32], strides = [1, 1]} : vector<8x32xf32> to vector<1x32xf32>
    %15 = vector.broadcast %14 : vector<1x32xf32> to vector<128x32xf32>
    %16 = arith.addf %3, %15 : vector<128x32xf32>
    %17 = vector.extract_strided_slice %5 {offsets = [1, 0], sizes = [1, 32], strides = [1, 1]} : vector<8x32xf32> to vector<1x32xf32>
    %18 = vector.broadcast %17 : vector<1x32xf32> to vector<128x32xf32>
    %19 = arith.addf %3, %18 : vector<128x32xf32>
    %20 = vector.extract_strided_slice %5 {offsets = [2, 0], sizes = [1, 32], strides = [1, 1]} : vector<8x32xf32> to vector<1x32xf32>
    %21 = vector.broadcast %20 : vector<1x32xf32> to vector<128x32xf32>
    %22 = arith.addf %3, %21 : vector<128x32xf32>
    %23 = vector.extract_strided_slice %5 {offsets = [3, 0], sizes = [1, 32], strides = [1, 1]} : vector<8x32xf32> to vector<1x32xf32>
    %24 = vector.broadcast %23 : vector<1x32xf32> to vector<128x32xf32>
    %25 = arith.addf %3, %24 : vector<128x32xf32>
    %26 = vector.extract_strided_slice %5 {offsets = [4, 0], sizes = [1, 32], strides = [1, 1]} : vector<8x32xf32> to vector<1x32xf32>
    %27 = vector.broadcast %26 : vector<1x32xf32> to vector<128x32xf32>
    %28 = arith.addf %3, %27 : vector<128x32xf32>
    %29 = vector.extract_strided_slice %5 {offsets = [5, 0], sizes = [1, 32], strides = [1, 1]} : vector<8x32xf32> to vector<1x32xf32>
    %30 = vector.broadcast %29 : vector<1x32xf32> to vector<128x32xf32>
    %31 = arith.addf %3, %30 : vector<128x32xf32>
    %32 = vector.extract_strided_slice %5 {offsets = [6, 0], sizes = [1, 32], strides = [1, 1]} : vector<8x32xf32> to vector<1x32xf32>
    %33 = vector.broadcast %32 : vector<1x32xf32> to vector<128x32xf32>
    %34 = arith.addf %3, %33 : vector<128x32xf32>
    %35 = vector.extract_strided_slice %5 {offsets = [7, 0], sizes = [1, 32], strides = [1, 1]} : vector<8x32xf32> to vector<1x32xf32>
    %36 = vector.broadcast %35 : vector<1x32xf32> to vector<128x32xf32>
    %37 = arith.addf %3, %36 : vector<128x32xf32>
    %38 = tpu.concatenate %16, %19, %22, %25, %28, %31, %34, %37 in 0 : vector<128x32xf32>, vector<128x32xf32>, vector<128x32xf32>, vector<128x32xf32>, vector<128x32xf32>, vector<128x32xf32>, vector<128x32xf32>, vector<128x32xf32> -> vector<1024x32xf32>
    %39 = math.tanh %38 : vector<1024x32xf32>
    %40 = arith.truncf %39 : vector<1024x32xf32> to vector<1024x32xbf16>
    "tpu.trace_start"() <{level = 10 : i32, message = "oe,ne->on"}> : () -> ()
    %cst_19 = arith.constant dense<0.000000e+00> : vector<1x1024xf32>
    %41 = tpu.matmul %12, %40, %cst_19 {dimension_numbers = #tpu.dot_dimension_numbers<[1], [1], [0], [0], [0, 0, 1, 0], [], []>} : vector<1x32xbf16>, vector<1024x32xbf16>, vector<1x1024xf32> -> vector<1x1024xf32>
    "tpu.trace_stop"() : () -> ()
    %42 = vector.broadcast %13 : vector<1x1xf32> to vector<1x1024xf32>
    %43 = arith.addf %41, %42 : vector<1x1024xf32>
    %44 = vector.shape_cast %43 : vector<1x1024xf32> to vector<1x1x1024xf32>
    %c0_20 = arith.constant 0 : index
    %c0_21 = arith.constant 0 : index
    %c0_22 = arith.constant 0 : index
    %45 = vector.load %arg9[%c0_20, %c0_21, %c0_22] : memref<1x1x1024xf32, #tpu.memory_space<vmem>>, vector<1x1x1024xf32>
    tpu.vector_store %arg9[%c0_20, %c0_21, %c0_22], %44 {strides = array<i32>} : memref<1x1x1024xf32, #tpu.memory_space<vmem>>, vector<1x1x1024xf32>,
    return
  }
  func.func @transform_0(%arg0: i32) -> (i32, i32) {
    %c0_i32 = arith.constant 0 : i32
    %c0_i32_0 = arith.constant 0 : i32
    return %arg0, %c0_i32 : i32, i32
  }
  func.func @transform_1(%arg0: i32) -> (i32, i32) {
    %c0_i32 = arith.constant 0 : i32
    %c0_i32_0 = arith.constant 0 : i32
    return %arg0, %c0_i32 : i32, i32
  }
  func.func @transform_2(%arg0: i32) -> (i32, i32) {
    %c0_i32 = arith.constant 0 : i32
    %c0_i32_0 = arith.constant 0 : i32
    %c0_i32_1 = arith.constant 0 : i32
    return %c0_i32, %c0_i32_0 : i32, i32
  }
  func.func @transform_3(%arg0: i32) -> (i32, i32) {
    %c0_i32 = arith.constant 0 : i32
    %c0_i32_0 = arith.constant 0 : i32
    %c0_i32_1 = arith.constant 0 : i32
    return %c0_i32, %c0_i32_0 : i32, i32
  }
  func.func @transform_4(%arg0: i32) -> (i32, i32) {
    %c0_i32 = arith.constant 0 : i32
    %c0_i32_0 = arith.constant 0 : i32
    %c0_i32_1 = arith.constant 0 : i32
    return %c0_i32, %c0_i32_0 : i32, i32
  }
  func.func @transform_5(%arg0: i32) -> (i32, i32) {
    %c0_i32 = arith.constant 0 : i32
    %c0_i32_0 = arith.constant 0 : i32
    %c0_i32_1 = arith.constant 0 : i32
    return %c0_i32, %c0_i32_0 : i32, i32
  }
  func.func @transform_6(%arg0: i32) -> (i32, i32) {
    %c0_i32 = arith.constant 0 : i32
    %c0_i32_0 = arith.constant 0 : i32
    %c0_i32_1 = arith.constant 0 : i32
    return %c0_i32, %c0_i32_0 : i32, i32
  }
  func.func @transform_7(%arg0: i32) -> (i32, i32) {
    %c0_i32 = arith.constant 0 : i32
    %c0_i32_0 = arith.constant 0 : i32
    %c0_i32_1 = arith.constant 0 : i32
    return %c0_i32, %c0_i32_0 : i32, i32
  }
  func.func @transform_8(%arg0: i32) -> (i32, i32, i32) {
    %c0_i32 = arith.constant 0 : i32
    %c0_i32_0 = arith.constant 0 : i32
    %c0_i32_1 = arith.constant 0 : i32
    return %arg0, %c0_i32, %c0_i32_0 : i32, i32, i32
  }
  func.func @transform_9(%arg0: i32) -> (i32, i32) {
    %c0_i32 = arith.constant 0 : i32
    %c0_i32_0 = arith.constant 0 : i32
    return %arg0, %c0_i32 : i32, i32
  }
}

</mosaic_0001>

<llo_original>
// kernel: tpu_custom_call.1
$region0: #{tpu_custom_call.1}
  #allocation0 [shape = 'u32[]', space=smem, size = 0x4, offset = 0x4, fixed_abs, tag = 'smem constant byte address 0x4 - core index']
  #allocation1 [shape = 'u32[144,128]{1,0:T(1,128)}', space=vmem, size = 0x12000, scoped, tag = 'internal scratch']
  #allocation2 [shape = 'f32[1,1]{1,0:T(1,128)S(1)}', space=vmem, size = 0x200, scoped, tag = 'scoped memory for tpu_custom_call.1']
  %s0 = inlined_call_operand.vmem [shape: bf16[256,32], index: 0, kind: input, shape index: {}]
  %s1 = inlined_call_operand.vmem [shape: bf16[16,32], index: 1, kind: input, shape index: {}]
  %s2 = inlined_call_operand.vmem [shape: bf16[32,32], index: 2, kind: input, shape index: {}]
  %s3 = inlined_call_operand.vmem [shape: bf16[32,32], index: 3, kind: input, shape index: {}]
  %s4 = inlined_call_operand.vmem [shape: bf16[32,128], index: 4, kind: input, shape index: {}]
  %s5 = inlined_call_operand.vmem [shape: bf16[1,32], index: 5, kind: input, shape index: {}]
  %s6 = inlined_call_operand.<no memory space> [shape: f32[1,1], index: 6, kind: input, shape index: {}]
  %s7 = inlined_call_operand.vmem [shape: f32[1,128], index: 7, kind: input, shape index: {}]
  %s8 = inlined_call_operand.hbm [shape: f32[2,1,1024], index: 8, kind: output, shape index: {0}]
  %s9 = inlined_call_operand.hbm [shape: f32[16,128], index: 9, kind: output, shape index: {1}]
  %10 = xla_tuple %s8, %s9
  %s11 = sld [smem:[#allocation0]]
  $region73: #{tpu_custom_call.1} parent=0
    _
  %s13 = ssub.s32 1, %s11
  %s14 = scalar_select 0, %s13, %s11
  %v15 = vstv %s6
  %16 = vst [vmem:[#allocation2] sm:$0x1] %v15
  $region1: #{tpu_custom_call.1} parent=0
    #allocation3 [shape = 'u8[8192]{0}', space=vmem, size = 0x2000, scoped, tag = 'output window, operand 0']
    #allocation4 [shape = 's32[2]{0}', space=sflag, size = 0x8, scoped, tag = 'scoped memory for tpu_custom_call.1']
    #allocation5 [shape = 'u8[8192]{0}', space=vmem, size = 0x2000, scoped, tag = 'output window, operand 1']
    #allocation6 [shape = 's32[2]{0}', space=sflag, size = 0x8, scoped, tag = 'scoped memory for tpu_custom_call.1']
    %17 = vsyncpa [#allocation4], 0
    %s18 = scalar_lea.sflag [#allocation4], 1
    %19 = vsyncpa %s18, 0
    %20 = vsyncpa [#allocation6], 0
    %s21 = scalar_lea.sflag [#allocation6], 1
    %22 = vsyncpa %s21, 0
    loop: start=0, step=1, limit=4
    $region2: #{tpu_custom_call.1} parent=1 // loop_pre_header
      _
    $region3: #{tpu_custom_call.1} parent=1 // loop_header
      %s24 = sphi 0, %s28
      %p25 = scmp.ge.s32.totalorder %s24, 4
      %s34 = sphi 0, %s36
      %s37 = sphi 0, %s34
      %s38 = sphi 0, %s37
      %s54 = sphi 0, %s38
      %s60 = sphi 0, %s62
      %s63 = sphi 0, %s60
      %s64 = sphi 0, %s63
      %s80 = sphi 0, %s64
      %s84 = sphi 0, %s84
      %s86 = sphi 0, %s84
      %s87 = sphi 0, %s86
      %s101 = sphi 0, %s87
      %s105 = sphi 0, %s105
      %s107 = sphi 0, %s105
      %s108 = sphi 0, %s107
      %s122 = sphi 0, %s108
      %s126 = sphi 0, %s126
      %s128 = sphi 0, %s126
      %s129 = sphi 0, %s128
      %s143 = sphi 0, %s129
      %s147 = sphi 0, %s147
      %s149 = sphi 0, %s147
      %s150 = sphi 0, %s149
      %s164 = sphi 0, %s150
      %s168 = sphi 0, %s168
      %s170 = sphi 0, %s168
      %s171 = sphi 0, %s170
      %s185 = sphi 0, %s171
      %s189 = sphi 0, %s189
      %s191 = sphi 0, %s189
      %s192 = sphi 0, %s191
      %s206 = sphi 0, %s192
      %s212 = sphi 0, %s214
      %s215 = sphi 0, %s212
      %s216 = sphi 0, %s215
      %s232 = sphi 0, %s216
      %s238 = sphi 0, %s240
      %s241 = sphi 0, %s238
      %s242 = sphi 0, %s241
      %s258 = sphi 0, %s242
    $region4: #{tpu_custom_call.1} parent=1 // loop_header_branch
      %27 = sbr.rel (%p25) target = $region8
    $region5: #{tpu_custom_call.1} parent=1 // loop_body
      %s29 = ssub.s32 %s24, 1
      %s30 = ssub.s32 %s24, 2
      %s31 = sadd.s32 %s24, 1
      %s32 = ssub.s32 %s24, %s31
      %p33 = scmp.eq.s32.totalorder %s32, 0
      %s35 = sadd.s32 %s34, 1
      %s36 = scalar_select %p33, %s34, %s35
      %p39 = pneg %p33
      %p40 = scmp.eq.s32.totalorder %s24, 1
      %p41 = por %p39, %p40
      %p42 = scmp.ne.s32.totalorder %s34, %s37
      %p43 = scmp.eq.s32.totalorder %s24, 0
      %p44 = por %p42, %p43
      %p45 = scmp.ne.s32.totalorder %s34, %s37
      %p46 = scmp.eq.s32.totalorder %s29, 1
      %p47 = por %p45, %p46
      %p48 = scmp.ne.s32.totalorder %s37, %s38
      %p49 = scmp.eq.s32.totalorder %s29, 0
      %p50 = por %p48, %p49
      %p51 = scmp.ne.s32.totalorder %s37, %s38
      %p52 = scmp.eq.s32.totalorder %s30, 1
      %p53 = por %p51, %p52
      %p55 = scmp.ne.s32.totalorder %s38, %s54
      %p56 = scmp.eq.s32.totalorder %s30, 0
      %p57 = por %p55, %p56
      %s58 = ssub.s32 %s24, %s31
      %p59 = scmp.eq.s32.totalorder %s58, 0
      %s61 = sadd.s32 %s60, 1
      %s62 = scalar_select %p59, %s60, %s61
      %p65 = pneg %p59
      %p66 = scmp.eq.s32.totalorder %s24, 1
      %p67 = por %p65, %p66
      %p68 = scmp.ne.s32.totalorder %s60, %s63
      %p69 = scmp.eq.s32.totalorder %s24, 0
      %p70 = por %p68, %p69
      %p71 = scmp.ne.s32.totalorder %s60, %s63
      %p72 = scmp.eq.s32.totalorder %s29, 1
      %p73 = por %p71, %p72
      %p74 = scmp.ne.s32.totalorder %s63, %s64
      %p75 = scmp.eq.s32.totalorder %s29, 0
      %p76 = por %p74, %p75
      %p77 = scmp.ne.s32.totalorder %s63, %s64
      %p78 = scmp.eq.s32.totalorder %s30, 1
      %p79 = por %p77, %p78
      %p81 = scmp.ne.s32.totalorder %s64, %s80
      %p82 = scmp.eq.s32.totalorder %s30, 0
      %p83 = por %p81, %p82
      %s85 = sadd.s32 %s84, 1
      %p88 = scmp.eq.s32.totalorder %s24, 1
      %p89 = scmp.ne.s32.totalorder %s84, %s86
      %p90 = scmp.eq.s32.totalorder %s24, 0
      %p91 = por %p89, %p90
      %p92 = scmp.ne.s32.totalorder %s84, %s86
      %p93 = scmp.eq.s32.totalorder %s29, 1
      %p94 = por %p92, %p93
      %p95 = scmp.ne.s32.totalorder %s86, %s87
      %p96 = scmp.eq.s32.totalorder %s29, 0
      %p97 = por %p95, %p96
      %p98 = scmp.ne.s32.totalorder %s86, %s87
      %p99 = scmp.eq.s32.totalorder %s30, 1
      %p100 = por %p98, %p99
      %p102 = scmp.ne.s32.totalorder %s87, %s101
      %p103 = scmp.eq.s32.totalorder %s30, 0
      %p104 = por %p102, %p103
      %s106 = sadd.s32 %s105, 1
      %p109 = scmp.eq.s32.totalorder %s24, 1
      %p110 = scmp.ne.s32.totalorder %s105, %s107
      %p111 = scmp.eq.s32.totalorder %s24, 0
      %p112 = por %p110, %p111
      %p113 = scmp.ne.s32.totalorder %s105, %s107
      %p114 = scmp.eq.s32.totalorder %s29, 1
      %p115 = por %p113, %p114
      %p116 = scmp.ne.s32.totalorder %s107, %s108
      %p117 = scmp.eq.s32.totalorder %s29, 0
      %p118 = por %p116, %p117
      %p119 = scmp.ne.s32.totalorder %s107, %s108
      %p120 = scmp.eq.s32.totalorder %s30, 1
      %p121 = por %p119, %p120
      %p123 = scmp.ne.s32.totalorder %s108, %s122
      %p124 = scmp.eq.s32.totalorder %s30, 0
      %p125 = por %p123, %p124
      %s127 = sadd.s32 %s126, 1
      %p130 = scmp.eq.s32.totalorder %s24, 1
      %p131 = scmp.ne.s32.totalorder %s126, %s128
      %p132 = scmp.eq.s32.totalorder %s24, 0
      %p133 = por %p131, %p132
      %p134 = scmp.ne.s32.totalorder %s126, %s128
      %p135 = scmp.eq.s32.totalorder %s29, 1
      %p136 = por %p134, %p135
      %p137 = scmp.ne.s32.totalorder %s128, %s129
      %p138 = scmp.eq.s32.totalorder %s29, 0
      %p139 = por %p137, %p138
      %p140 = scmp.ne.s32.totalorder %s128, %s129
      %p141 = scmp.eq.s32.totalorder %s30, 1
      %p142 = por %p140, %p141
      %p144 = scmp.ne.s32.totalorder %s129, %s143
      %p145 = scmp.eq.s32.totalorder %s30, 0
      %p146 = por %p144, %p145
      %s148 = sadd.s32 %s147, 1
      %p151 = scmp.eq.s32.totalorder %s24, 1
      %p152 = scmp.ne.s32.totalorder %s147, %s149
      %p153 = scmp.eq.s32.totalorder %s24, 0
      %p154 = por %p152, %p153
      %p155 = scmp.ne.s32.totalorder %s147, %s149
      %p156 = scmp.eq.s32.totalorder %s29, 1
      %p157 = por %p155, %p156
      %p158 = scmp.ne.s32.totalorder %s149, %s150
      %p159 = scmp.eq.s32.totalorder %s29, 0
      %p160 = por %p158, %p159
      %p161 = scmp.ne.s32.totalorder %s149, %s150
      %p162 = scmp.eq.s32.totalorder %s30, 1
      %p163 = por %p161, %p162
      %p165 = scmp.ne.s32.totalorder %s150, %s164
      %p166 = scmp.eq.s32.totalorder %s30, 0
      %p167 = por %p165, %p166
      %s169 = sadd.s32 %s168, 1
      %p172 = scmp.eq.s32.totalorder %s24, 1
      %p173 = scmp.ne.s32.totalorder %s168, %s170
      %p174 = scmp.eq.s32.totalorder %s24, 0
      %p175 = por %p173, %p174
      %p176 = scmp.ne.s32.totalorder %s168, %s170
      %p177 = scmp.eq.s32.totalorder %s29, 1
      %p178 = por %p176, %p177
      %p179 = scmp.ne.s32.totalorder %s170, %s171
      %p180 = scmp.eq.s32.totalorder %s29, 0
      %p181 = por %p179, %p180
      %p182 = scmp.ne.s32.totalorder %s170, %s171
      %p183 = scmp.eq.s32.totalorder %s30, 1
      %p184 = por %p182, %p183
      %p186 = scmp.ne.s32.totalorder %s171, %s185
      %p187 = scmp.eq.s32.totalorder %s30, 0
      %p188 = por %p186, %p187
      %s190 = sadd.s32 %s189, 1
      %p193 = scmp.eq.s32.totalorder %s24, 1
      %p194 = scmp.ne.s32.totalorder %s189, %s191
      %p195 = scmp.eq.s32.totalorder %s24, 0
      %p196 = por %p194, %p195
      %p197 = scmp.ne.s32.totalorder %s189, %s191
      %p198 = scmp.eq.s32.totalorder %s29, 1
      %p199 = por %p197, %p198
      %p200 = scmp.ne.s32.totalorder %s191, %s192
      %p201 = scmp.eq.s32.totalorder %s29, 0
      %p202 = por %p200, %p201
      %p203 = scmp.ne.s32.totalorder %s191, %s192
      %p204 = scmp.eq.s32.totalorder %s30, 1
      %p205 = por %p203, %p204
      %p207 = scmp.ne.s32.totalorder %s192, %s206
      %p208 = scmp.eq.s32.totalorder %s30, 0
      %p209 = por %p207, %p208
      %s210 = ssub.s32 %s24, %s31
      %p211 = scmp.eq.s32.totalorder %s210, 0
      %s213 = sadd.s32 %s212, 1
      %s214 = scalar_select %p211, %s212, %s213
      %p217 = pneg %p211
      %p218 = scmp.eq.s32.totalorder %s24, 1
      %p219 = por %p217, %p218
      %p220 = scmp.ne.s32.totalorder %s212, %s215
      %p221 = scmp.eq.s32.totalorder %s24, 0
      %p222 = por %p220, %p221
      %p223 = scmp.ne.s32.totalorder %s212, %s215
      %p224 = scmp.eq.s32.totalorder %s29, 1
      %p225 = por %p223, %p224
      %p226 = scmp.ne.s32.totalorder %s215, %s216
      %p227 = scmp.eq.s32.totalorder %s29, 0
      %p228 = por %p226, %p227
      %p229 = scmp.ne.s32.totalorder %s215, %s216
      %p230 = scmp.eq.s32.totalorder %s30, 1
      %p231 = por %p229, %p230
      %p233 = scmp.ne.s32.totalorder %s216, %s232
      %p234 = scmp.eq.s32.totalorder %s30, 0
      %p235 = por %p233, %p234
      %s236 = ssub.s32 %s24, %s31
      %p237 = scmp.eq.s32.totalorder %s236, 0
      %s239 = sadd.s32 %s238, 1
      %s240 = scalar_select %p237, %s238, %s239
      %p243 = pneg %p237
      %p244 = scmp.eq.s32.totalorder %s24, 1
      %p245 = por %p243, %p244
      %p246 = scmp.ne.s32.totalorder %s238, %s241
      %p247 = scmp.eq.s32.totalorder %s24, 0
      %p248 = por %p246, %p247
      %p249 = scmp.ne.s32.totalorder %s238, %s241
      %p250 = scmp.eq.s32.totalorder %s29, 1
      %p251 = por %p249, %p250
      %p252 = scmp.ne.s32.totalorder %s241, %s242
      %p253 = scmp.eq.s32.totalorder %s29, 0
      %p254 = por %p252, %p253
      %p255 = scmp.ne.s32.totalorder %s241, %s242
      %p256 = scmp.eq.s32.totalorder %s30, 1
      %p257 = por %p255, %p256
      %p259 = scmp.ne.s32.totalorder %s242, %s258
      %p260 = scmp.eq.s32.totalorder %s30, 0
      %p261 = por %p259, %p260
      %p262 = scmp.le.s32.totalorder 1, %s24
      %p263 = scmp.lt.s32.totalorder %s24, 3
      %p264 = pnand %p262, %p263
      %p265 = pneg %p264
      // Predicated region
      $region9: #{tpu_custom_call.1} parent=5 // pred_check
        _
      $region10: #{tpu_custom_call.1} parent=5 // pred_check_branch
        %267 = sbr.rel (%p264) target = $region12
      $region11: #{tpu_custom_call.1} parent=5 // pred_region
        %s268 = ssub.s32 %s24, 1
        // Predicated region
        $region13: #{tpu_custom_call.1} parent=11 // pred_check
          %p269 = pneg %p97
        $region14: #{tpu_custom_call.1} parent=11 // pred_check_branch
          %271 = sbr.rel (%p269) target = $region16
        $region15: #{tpu_custom_call.1} parent=11 // pred_region
          _
        $region16: #{tpu_custom_call.1} parent=11 // pred_fallthru
          _
        // Predicated region
        $region17: #{tpu_custom_call.1} parent=11 // pred_check
          %p272 = pneg %p118
        $region18: #{tpu_custom_call.1} parent=11 // pred_check_branch
          %274 = sbr.rel (%p272) target = $region20
        $region19: #{tpu_custom_call.1} parent=11 // pred_region
          _
        $region20: #{tpu_custom_call.1} parent=11 // pred_fallthru
          _
        // Predicated region
        $region21: #{tpu_custom_call.1} parent=11 // pred_check
          %p275 = pneg %p139
        $region22: #{tpu_custom_call.1} parent=11 // pred_check_branch
          %277 = sbr.rel (%p275) target = $region24
        $region23: #{tpu_custom_call.1} parent=11 // pred_region
          _
        $region24: #{tpu_custom_call.1} parent=11 // pred_fallthru
          _
        // Predicated region
        $region25: #{tpu_custom_call.1} parent=11 // pred_check
          %p278 = pneg %p160
        $region26: #{tpu_custom_call.1} parent=11 // pred_check_branch
          %280 = sbr.rel (%p278) target = $region28
        $region27: #{tpu_custom_call.1} parent=11 // pred_region
          _
        $region28: #{tpu_custom_call.1} parent=11 // pred_fallthru
          _
        // Predicated region
        $region29: #{tpu_custom_call.1} parent=11 // pred_check
          %p281 = pneg %p181
        $region30: #{tpu_custom_call.1} parent=11 // pred_check_branch
          %283 = sbr.rel (%p281) target = $region32
        $region31: #{tpu_custom_call.1} parent=11 // pred_region
          _
        $region32: #{tpu_custom_call.1} parent=11 // pred_fallthru
          _
        // Predicated region
        $region33: #{tpu_custom_call.1} parent=11 // pred_check
          %p284 = pneg %p202
        $region34: #{tpu_custom_call.1} parent=11 // pred_check_branch
          %286 = sbr.rel (%p284) target = $region36
        $region35: #{tpu_custom_call.1} parent=11 // pred_region
          _
        $region36: #{tpu_custom_call.1} parent=11 // pred_fallthru
          _
      $region12: #{tpu_custom_call.1} parent=5 // pred_fallthru
        _
      %p287 = scmp.lt.s32.totalorder %s24, 2
      // Predicated region
      $region37: #{tpu_custom_call.1} parent=5 // pred_check
        %p288 = pneg %p287
      $region38: #{tpu_custom_call.1} parent=5 // pred_check_branch
        %290 = sbr.rel (%p288) target = $region40
      $region39: #{tpu_custom_call.1} parent=5 // pred_region
        // Predicated region
        $region41: #{tpu_custom_call.1} parent=39 // pred_check
          %p291 = pneg %p44
        $region42: #{tpu_custom_call.1} parent=39 // pred_check_branch
          %293 = sbr.rel (%p291) target = $region44
        $region43: #{tpu_custom_call.1} parent=39 // pred_region
          %s294 = smul.u32 16, %s24
          %p295 = scmp.lt.s32.totalorder %s294, 31
          %s296 = scalar_select %p295, %s294, 31
          %s297 = smul.addr %s296, 4
          %s298 = scalar_lea.vmem %s0, %s297
          %s299 = smul.u32 16, %s24
        $region44: #{tpu_custom_call.1} parent=39 // pred_fallthru
          _
        // Predicated region
        $region45: #{tpu_custom_call.1} parent=39 // pred_check
          %p300 = pneg %p70
        $region46: #{tpu_custom_call.1} parent=39 // pred_check_branch
          %302 = sbr.rel (%p300) target = $region48
        $region47: #{tpu_custom_call.1} parent=39 // pred_region
          %p303 = scmp.lt.s32.totalorder %s24, 1
          %s304 = scalar_select %p303, %s24, 1
          %s305 = smul.addr %s304, 4
          %s306 = scalar_lea.vmem %s1, %s305
        $region48: #{tpu_custom_call.1} parent=39 // pred_fallthru
          _
      $region40: #{tpu_custom_call.1} parent=5 // pred_fallthru
        _
      %p307 = scmp.le.s32.totalorder 1, %s24
      %p308 = scmp.lt.s32.totalorder %s24, 3
      %p309 = pnand %p307, %p308
      %p310 = pneg %p309
      // Predicated region
      $region49: #{tpu_custom_call.1} parent=5 // pred_check
        _
      $region50: #{tpu_custom_call.1} parent=5 // pred_check_branch
        %312 = sbr.rel (%p309) target = $region52
      $region51: #{tpu_custom_call.1} parent=5 // pred_region
        %s313 = ssub.s32 %s24, 1
        %s314 = smul.u32 16, %s29
        %p315 = scmp.lt.s32.totalorder %s314, 31
        %s316 = scalar_select %p315, %s314, 31
        %s317 = smul.addr %s316, 4
        %s318 = scalar_lea.vmem %s0, %s317
        %p319 = pneg %p50
        %p320 = pneg %p47
        %p321 = scmp.lt.s32.totalorder %s29, 1
        %s322 = scalar_select %p321, %s29, 1
        %s323 = smul.addr %s322, 4
        %s324 = scalar_lea.vmem %s1, %s323
        %p325 = pneg %p76
        %p326 = pneg %p73
        %p327 = pneg %p97
        %p328 = pneg %p94
        %p329 = pneg %p118
        %p330 = pneg %p115
        %p331 = pneg %p139
        %p332 = pneg %p136
        %p333 = pneg %p160
        %p334 = pneg %p157
        %p335 = pneg %p181
        %p336 = pneg %p178
        %p337 = pneg %p202
        %p338 = pneg %p199
        %p339 = pneg %p228
        %p340 = pneg %p225
        %s341 = sand.u32 %s215, 1
        %s342 = scalar_lea.sflag [#allocation4], %s341
        %s343 = sand.u32 %s215, 1
        %s344 = smul.addr %s343, 8
        %s345 = scalar_lea.vmem [#allocation3], %s344
        %p346 = pneg %p254
        %p347 = pneg %p251
        %s348 = sand.u32 %s241, 1
        %s349 = scalar_lea.sflag [#allocation6], %s348
        %s350 = sand.u32 %s241, 1
        %s351 = smul.addr %s350, 8
        %s352 = scalar_lea.vmem [#allocation5], %s351
        %s353 = smul.u32 16, %s29
        %p354 = scmp.lt.s32.totalorder %s353, 31
        %s355 = scalar_select %p354, %s353, 31
        %s356 = smul.addr %s355, 4
        %s357 = scalar_lea.vmem %s0, %s356
        %s358 = smul.u32 16, %s29
        %p359 = scmp.lt.s32.totalorder %s29, 1
        %s360 = scalar_select %p359, %s29, 1
        %s361 = smul.addr %s360, 4
        %s362 = scalar_lea.vmem %s1, %s361
        %v364 = vld [vmem:[%s357] sm:$0xf]
        %v365 = vld [vmem:[%s357 + $0x4] sm:$0xf]
        %v366 = vld [vmem:[%s357 + $0x8] sm:$0xf]
        %v367 = vld [vmem:[%s357 + $0xc] sm:$0xf]
        %v368 = vld [vmem:[%s357 + $0x10] sm:$0xf]
        %v369 = vld [vmem:[%s357 + $0x14] sm:$0xf]
        %v370 = vld [vmem:[%s357 + $0x18] sm:$0xf]
        %v371 = vld [vmem:[%s357 + $0x1c] sm:$0xf]
        %v372 = vld [vmem:[%s357 + $0x20] sm:$0xf]
        %v373 = vld [vmem:[%s357 + $0x24] sm:$0xf]
        %v374 = vld [vmem:[%s357 + $0x28] sm:$0xf]
        %v375 = vld [vmem:[%s357 + $0x2c] sm:$0xf]
        %v376 = vld [vmem:[%s357 + $0x30] sm:$0xf]
        %v377 = vld [vmem:[%s357 + $0x34] sm:$0xf]
        %v378 = vld [vmem:[%s357 + $0x38] sm:$0xf]
        %v379 = vld [vmem:[%s357 + $0x3c] sm:$0xf]
        %v380 = vld [vmem:[%s362] sm:$0xf]
        %v381 = vld [vmem:[%s2] sm:$0xf]
        %v382 = vld [vmem:[%s2 + $0x4] sm:$0xf]
        %v383 = vld [vmem:[%s2 + $0x8] sm:$0xf]
        %v384 = vld [vmem:[%s2 + $0xc] sm:$0xf]
        %v401 = vunpack.c.l.b16 %v364
        %v402 = vunpack.c.l.b16 %v365
        %v403 = vunpack.c.l.b16 %v366
        %v404 = vunpack.c.l.b16 %v367
        %v405 = vunpack.c.l.b16 %v368
        %v406 = vunpack.c.l.b16 %v369
        %v407 = vunpack.c.l.b16 %v370
        %v408 = vunpack.c.l.b16 %v371
        %v409 = vunpack.c.l.b16 %v372
        %v410 = vunpack.c.l.b16 %v373
        %v411 = vunpack.c.l.b16 %v374
        %v412 = vunpack.c.l.b16 %v375
        %v413 = vunpack.c.l.b16 %v376
        %v414 = vunpack.c.l.b16 %v377
        %v415 = vunpack.c.l.b16 %v378
        %v416 = vunpack.c.l.b16 %v379
        %v417 = vpack.c.b16 %v402, %v401
        %v418 = vpack.c.b16 %v404, %v403
        %v419 = vpack.c.b16 %v406, %v405
        %v420 = vpack.c.b16 %v408, %v407
        %v421 = vpack.c.b16 %v410, %v409
        %v422 = vpack.c.b16 %v412, %v411
        %v423 = vpack.c.b16 %v414, %v413
        %v424 = vpack.c.b16 %v416, %v415
        %v429 = vunpack.c.l.b16 %v381
        %v430 = vunpack.c.l.b16 %v382
        %v431 = vunpack.c.l.b16 %v383
        %v432 = vunpack.c.l.b16 %v384
        %v433 = vpack.c.b16 %v430, %v429
        %v434 = vpack.c.b16 %v432, %v431
        %vm437 = vcmask 261120
        %v439 = vsel %vm437, %v417, 0
        %v442 = vsel %vm437, %v418, 0
        %v445 = vsel %vm437, %v419, 0
        %v448 = vsel %vm437, %v420, 0
        %v451 = vsel %vm437, %v421, 0
        %v454 = vsel %vm437, %v422, 0
        %v457 = vsel %vm437, %v423, 0
        %v460 = vsel %vm437, %v424, 0
        %462 = vmatprep.subr.bf16.mxu0 0
        %463 = vmatpush1.bf16.msra.mxu0 %v433
        %464 = vmatprep.subr.bf16.mxu0 0
        %465 = vmatpush1.bf16.msra.mxu0 %v434
        %466 = vmatprep.subr.bf16.mxu0 0
        %467 = vmatpush1.bf16.msra.mxu0 0
        %468 = vmatprep.subr.bf16.mxu0 0
        %469 = vmatpush1.bf16.msra.mxu0 0
        %470 = vmatprep.subr.bf16.mxu0 0
        %471 = vmatpush1.bf16.msra.mxu0 0
        %472 = vmatprep.subr.bf16.mxu0 0
        %473 = vmatpush1.bf16.msra.mxu0 0
        %474 = vmatprep.subr.bf16.mxu0 0
        %475 = vmatpush1.bf16.msra.mxu0 0
        %476 = vmatprep.subr.bf16.mxu0 0
        %477 = vmatpush1.bf16.msra.mxu0 0
        %478 = vmatprep.subr.bf16.mxu0 0
        %479 = vmatpush1.bf16.msra.mxu0 0
        %480 = vmatprep.subr.bf16.mxu0 0
        %481 = vmatpush1.bf16.msra.mxu0 0
        %482 = vmatprep.subr.bf16.mxu0 0
        %483 = vmatpush1.bf16.msra.mxu0 0
        %484 = vmatprep.subr.bf16.mxu0 0
        %485 = vmatpush1.bf16.msra.mxu0 0
        %486 = vmatprep.subr.bf16.mxu0 0
        %487 = vmatpush1.bf16.msra.mxu0 0
        %488 = vmatprep.subr.bf16.mxu0 0
        %489 = vmatpush1.bf16.msra.mxu0 0
        %490 = vmatprep.subr.bf16.mxu0 0
        %491 = vmatpush1.bf16.msra.mxu0 0
        %492 = vmatprep.subr.bf16.mxu0 0
        %493 = vmatpush1.bf16.msra.mxu0 0
        %494 = vmatprep.mubr.bf16.mxu0 0
        %495 = vmatmul.mubr.bf16.gmra.mrb[0].mxu0 %v439
        %v496 = vpop.f32.mrb[0].mxu0
        %v497 = vadd.f32 0.0, %v496
        %v498 = vpop.f32.mrb[0].mxu0
        %v499 = vpop.f32.mrb[0].mxu0
        %v500 = vadd.f32 0.0, %v499
        %v501 = vpop.f32.mrb[0].mxu0
        %502 = vmatprep.mubr.bf16.mxu0 0
        %503 = vmatmul.mubr.bf16.gmra.mrb[0].mxu0 %v442
        %v504 = vpop.f32.mrb[0].mxu0
        %v505 = vadd.f32 0.0, %v504
        %v506 = vpop.f32.mrb[0].mxu0
        %v507 = vpop.f32.mrb[0].mxu0
        %v508 = vadd.f32 0.0, %v507
        %v509 = vpop.f32.mrb[0].mxu0
        %510 = vmatprep.mubr.bf16.mxu0 0
        %511 = vmatmul.mubr.bf16.gmra.mrb[0].mxu0 %v445
        %v512 = vpop.f32.mrb[0].mxu0
        %v513 = vadd.f32 0.0, %v512
        %v514 = vpop.f32.mrb[0].mxu0
        %v515 = vpop.f32.mrb[0].mxu0
        %v516 = vadd.f32 0.0, %v515
        %v517 = vpop.f32.mrb[0].mxu0
        %518 = vmatprep.mubr.bf16.mxu0 0
        %519 = vmatmul.mubr.bf16.gmra.mrb[0].mxu0 %v448
        %v520 = vpop.f32.mrb[0].mxu0
        %v521 = vadd.f32 0.0, %v520
        %v522 = vpop.f32.mrb[0].mxu0
        %v523 = vpop.f32.mrb[0].mxu0
        %v524 = vadd.f32 0.0, %v523
        %v525 = vpop.f32.mrb[0].mxu0
        %526 = vmatprep.mubr.bf16.mxu0 0
        %527 = vmatmul.mubr.bf16.gmra.mrb[0].mxu0 %v451
        %v528 = vpop.f32.mrb[0].mxu0
        %v529 = vadd.f32 0.0, %v528
        %v530 = vpop.f32.mrb[0].mxu0
        %v531 = vpop.f32.mrb[0].mxu0
        %v532 = vadd.f32 0.0, %v531
        %v533 = vpop.f32.mrb[0].mxu0
        %534 = vmatprep.mubr.bf16.mxu0 0
        %535 = vmatmul.mubr.bf16.gmra.mrb[0].mxu0 %v454
        %v536 = vpop.f32.mrb[0].mxu0
        %v537 = vadd.f32 0.0, %v536
        %v538 = vpop.f32.mrb[0].mxu0
        %v539 = vpop.f32.mrb[0].mxu0
        %v540 = vadd.f32 0.0, %v539
        %v541 = vpop.f32.mrb[0].mxu0
        %542 = vmatprep.mubr.bf16.mxu0 0
        %543 = vmatmul.mubr.bf16.gmra.mrb[0].mxu0 %v457
        %v544 = vpop.f32.mrb[0].mxu0
        %v545 = vadd.f32 0.0, %v544
        %v546 = vpop.f32.mrb[0].mxu0
        %v547 = vpop.f32.mrb[0].mxu0
        %v548 = vadd.f32 0.0, %v547
        %v549 = vpop.f32.mrb[0].mxu0
        %550 = vmatprep.mubr.bf16.mxu0 0
        %551 = vmatmul.mubr.bf16.gmra.mrb[0].mxu0 %v460
        %v552 = vpop.f32.mrb[0].mxu0
        %v553 = vadd.f32 0.0, %v552
        %v554 = vpop.f32.mrb[0].mxu0
        %v555 = vpop.f32.mrb[0].mxu0
        %v556 = vadd.f32 0.0, %v555
        %v557 = vpop.f32.mrb[0].mxu0
        %558 = vdwg.mxu0
        %v559 = vld [vmem:[%s3] sm:$0xf]
        %v560 = vld [vmem:[%s3 + $0x4] sm:$0xf]
        %v561 = vld [vmem:[%s3 + $0x8] sm:$0xf]
        %v562 = vld [vmem:[%s3 + $0xc] sm:$0xf]
        %v567 = vunpack.c.l.b16 %v559
        %v568 = vunpack.c.l.b16 %v560
        %v569 = vunpack.c.l.b16 %v561
        %v570 = vunpack.c.l.b16 %v562
        %v571 = vpack.c.b16 %v568, %v567
        %v572 = vpack.c.b16 %v570, %v569
        %v576 = vsel %vm437, %v380, 0
        %578 = vmatprep.subr.bf16.mxu0 0
        %579 = vmatpush1.bf16.msra.mxu0 %v571
        %580 = vmatprep.subr.bf16.mxu0 0
        %581 = vmatpush1.bf16.msra.mxu0 %v572
        %582 = vmatprep.subr.bf16.mxu0 0
        %583 = vmatpush1.bf16.msra.mxu0 0
        %584 = vmatprep.subr.bf16.mxu0 0
        %585 = vmatpush1.bf16.msra.mxu0 0
        %586 = vmatprep.subr.bf16.mxu0 0
        %587 = vmatpush1.bf16.msra.mxu0 0
        %588 = vmatprep.subr.bf16.mxu0 0
        %589 = vmatpush1.bf16.msra.mxu0 0
        %590 = vmatprep.subr.bf16.mxu0 0
        %591 = vmatpush1.bf16.msra.mxu0 0
        %592 = vmatprep.subr.bf16.mxu0 0
        %593 = vmatpush1.bf16.msra.mxu0 0
        %594 = vmatprep.subr.bf16.mxu0 0
        %595 = vmatpush1.bf16.msra.mxu0 0
        %596 = vmatprep.subr.bf16.mxu0 0
        %597 = vmatpush1.bf16.msra.mxu0 0
        %598 = vmatprep.subr.bf16.mxu0 0
        %599 = vmatpush1.bf16.msra.mxu0 0
        %600 = vmatprep.subr.bf16.mxu0 0
        %601 = vmatpush1.bf16.msra.mxu0 0
        %602 = vmatprep.subr.bf16.mxu0 0
        %603 = vmatpush1.bf16.msra.mxu0 0
        %604 = vmatprep.subr.bf16.mxu0 0
        %605 = vmatpush1.bf16.msra.mxu0 0
        %606 = vmatprep.subr.bf16.mxu0 0
        %607 = vmatpush1.bf16.msra.mxu0 0
        %608 = vmatprep.subr.bf16.mxu0 0
        %609 = vmatpush1.bf16.msra.mxu0 0
        %610 = vmatprep.mubr.bf16.mxu0 0
        %611 = vmatmul.mubr.bf16.gmra.mrb[0].mxu0 %v576
        %v612 = vpop.f32.mrb[0].mxu0
        %v613 = vadd.f32 0.0, %v612
        %v614 = vpop.f32.mrb[0].mxu0
        %v615 = vpop.f32.mrb[0].mxu0
        %v616 = vpop.f32.mrb[0].mxu0
        %617 = vdwg.mxu0
        %v618 = vld [vmem:[%s4] sm:$0xf]
        %v619 = vld [vmem:[%s4 + $0x4] sm:$0xf]
        %v620 = vld [vmem:[%s4 + $0x8] sm:$0xf]
        %v621 = vld [vmem:[%s4 + $0xc] sm:$0xf]
        %v622 = vld [vmem:[%s7] sm:$0x1]
        %v624 = vlaneseq
        %v625 = vshrl.u32 %v624, 7
        %v626 = vsub.s32 0, %v625
        %v627 = vrot.slane %v622, %v626
        %v633 = vunpack.c.l.b16 %v618
        %v634 = vunpack.c.l.b16 %v619
        %v635 = vunpack.c.l.b16 %v620
        %v636 = vunpack.c.l.b16 %v621
        %v637 = vpack.c.b16 %v634, %v633
        %v638 = vpack.c.b16 %v636, %v635
        %641 = vmatprep.subr.bf16.mxu0 0
        %642 = vmatpush1.bf16.msra.mxu0 %v637
        %643 = vmatprep.subr.bf16.mxu0 0
        %644 = vmatpush1.bf16.msra.mxu0 %v638
        %645 = vmatprep.subr.bf16.mxu0 0
        %646 = vmatpush1.bf16.msra.mxu0 0
        %647 = vmatprep.subr.bf16.mxu0 0
        %648 = vmatpush1.bf16.msra.mxu0 0
        %649 = vmatprep.subr.bf16.mxu0 0
        %650 = vmatpush1.bf16.msra.mxu0 0
        %651 = vmatprep.subr.bf16.mxu0 0
        %652 = vmatpush1.bf16.msra.mxu0 0
        %653 = vmatprep.subr.bf16.mxu0 0
        %654 = vmatpush1.bf16.msra.mxu0 0
        %655 = vmatprep.subr.bf16.mxu0 0
        %656 = vmatpush1.bf16.msra.mxu0 0
        %657 = vmatprep.subr.bf16.mxu0 0
        %658 = vmatpush1.bf16.msra.mxu0 0
        %659 = vmatprep.subr.bf16.mxu0 0
        %660 = vmatpush1.bf16.msra.mxu0 0
        %661 = vmatprep.subr.bf16.mxu0 0
        %662 = vmatpush1.bf16.msra.mxu0 0
        %663 = vmatprep.subr.bf16.mxu0 0
        %664 = vmatpush1.bf16.msra.mxu0 0
        %665 = vmatprep.subr.bf16.mxu0 0
        %666 = vmatpush1.bf16.msra.mxu0 0
        %667 = vmatprep.subr.bf16.mxu0 0
        %668 = vmatpush1.bf16.msra.mxu0 0
        %669 = vmatprep.subr.bf16.mxu0 0
        %670 = vmatpush1.bf16.msra.mxu0 0
        %671 = vmatprep.subr.bf16.mxu0 0
        %672 = vmatpush1.bf16.msra.mxu0 0
        %673 = vmatprep.mubr.bf16.mxu0 0
        %674 = vmatmul.mubr.bf16.gmra.mrb[0].mxu0 %v576
        %v675 = vpop.f32.mrb[0].mxu0
        %v676 = vadd.f32 %v627, %v675
        %v677 = vpop.f32.mrb[0].mxu0
        %v678 = vpop.f32.mrb[0].mxu0
        %v679 = vpop.f32.mrb[0].mxu0
        %680 = vdwg.mxu0
        %681 = vst [vmem:[%s352] sm:$0xff] %v676
        %v682 = vld [vmem:[%s5] sm:$0x1]
        %v683 = vld [vmem:[#allocation2] sm:$0x1]
        %v684 = vlaneseq
        %v685 = vshrl.u32 %v684, 7
        %v686 = vsub.s32 0, %v685
        %v687 = vrot.slane %v613, %v686
        %v688 = vadd.f32 %v497, %v687
        %v689 = vadd.f32 %v500, %v687
        %v690 = vadd.f32 %v505, %v687
        %v691 = vadd.f32 %v508, %v687
        %v692 = vadd.f32 %v513, %v687
        %v693 = vadd.f32 %v516, %v687
        %v694 = vadd.f32 %v521, %v687
        %v695 = vadd.f32 %v524, %v687
        %v696 = vadd.f32 %v529, %v687
        %v697 = vadd.f32 %v532, %v687
        %v698 = vadd.f32 %v537, %v687
        %v699 = vadd.f32 %v540, %v687
        %v700 = vadd.f32 %v545, %v687
        %v701 = vadd.f32 %v548, %v687
        %v702 = vadd.f32 %v553, %v687
        %v703 = vadd.f32 %v556, %v687
        %v704 = vlaneseq
        %v705 = vshrl.u32 %v704, 7
        %v706 = vsub.s32 1, %v705
        %v707 = vrot.slane %v613, %v706
        %v708 = vadd.f32 %v497, %v707
        %v709 = vadd.f32 %v500, %v707
        %v710 = vadd.f32 %v505, %v707
        %v711 = vadd.f32 %v508, %v707
        %v712 = vadd.f32 %v513, %v707
        %v713 = vadd.f32 %v516, %v707
        %v714 = vadd.f32 %v521, %v707
        %v715 = vadd.f32 %v524, %v707
        %v716 = vadd.f32 %v529, %v707
        %v717 = vadd.f32 %v532, %v707
        %v718 = vadd.f32 %v537, %v707
        %v719 = vadd.f32 %v540, %v707
        %v720 = vadd.f32 %v545, %v707
        %v721 = vadd.f32 %v548, %v707
        %v722 = vadd.f32 %v553, %v707
        %v723 = vadd.f32 %v556, %v707
        %v724 = vlaneseq
        %v725 = vshrl.u32 %v724, 7
        %v726 = vsub.s32 2, %v725
        %v727 = vrot.slane %v613, %v726
        %v728 = vadd.f32 %v497, %v727
        %v729 = vadd.f32 %v500, %v727
        %v730 = vadd.f32 %v505, %v727
        %v731 = vadd.f32 %v508, %v727
        %v732 = vadd.f32 %v513, %v727
        %v733 = vadd.f32 %v516, %v727
        %v734 = vadd.f32 %v521, %v727
        %v735 = vadd.f32 %v524, %v727
        %v736 = vadd.f32 %v529, %v727
        %v737 = vadd.f32 %v532, %v727
        %v738 = vadd.f32 %v537, %v727
        %v739 = vadd.f32 %v540, %v727
        %v740 = vadd.f32 %v545, %v727
        %v741 = vadd.f32 %v548, %v727
        %v742 = vadd.f32 %v553, %v727
        %v743 = vadd.f32 %v556, %v727
        %v744 = vlaneseq
        %v745 = vshrl.u32 %v744, 7
        %v746 = vsub.s32 3, %v745
        %v747 = vrot.slane %v613, %v746
        %v748 = vadd.f32 %v497, %v747
        %v749 = vadd.f32 %v500, %v747
        %v750 = vadd.f32 %v505, %v747
        %v751 = vadd.f32 %v508, %v747
        %v752 = vadd.f32 %v513, %v747
        %v753 = vadd.f32 %v516, %v747
        %v754 = vadd.f32 %v521, %v747
        %v755 = vadd.f32 %v524, %v747
        %v756 = vadd.f32 %v529, %v747
        %v757 = vadd.f32 %v532, %v747
        %v758 = vadd.f32 %v537, %v747
        %v759 = vadd.f32 %v540, %v747
        %v760 = vadd.f32 %v545, %v747
        %v761 = vadd.f32 %v548, %v747
        %v762 = vadd.f32 %v553, %v747
        %v763 = vadd.f32 %v556, %v747
        %v764 = vlaneseq
        %v765 = vshrl.u32 %v764, 7
        %v766 = vsub.s32 4, %v765
        %v767 = vrot.slane %v613, %v766
        %v768 = vadd.f32 %v497, %v767
        %v769 = vadd.f32 %v500, %v767
        %v770 = vadd.f32 %v505, %v767
        %v771 = vadd.f32 %v508, %v767
        %v772 = vadd.f32 %v513, %v767
        %v773 = vadd.f32 %v516, %v767
        %v774 = vadd.f32 %v521, %v767
        %v775 = vadd.f32 %v524, %v767
        %v776 = vadd.f32 %v529, %v767
        %v777 = vadd.f32 %v532, %v767
        %v778 = vadd.f32 %v537, %v767
        %v779 = vadd.f32 %v540, %v767
        %v780 = vadd.f32 %v545, %v767
        %v781 = vadd.f32 %v548, %v767
        %v782 = vadd.f32 %v553, %v767
        %v783 = vadd.f32 %v556, %v767
        %v784 = vlaneseq
        %v785 = vshrl.u32 %v784, 7
        %v786 = vsub.s32 5, %v785
        %v787 = vrot.slane %v613, %v786
        %v788 = vadd.f32 %v497, %v787
        %v789 = vadd.f32 %v500, %v787
        %v790 = vadd.f32 %v505, %v787
        %v791 = vadd.f32 %v508, %v787
        %v792 = vadd.f32 %v513, %v787
        %v793 = vadd.f32 %v516, %v787
        %v794 = vadd.f32 %v521, %v787
        %v795 = vadd.f32 %v524, %v787
        %v796 = vadd.f32 %v529, %v787
        %v797 = vadd.f32 %v532, %v787
        %v798 = vadd.f32 %v537, %v787
        %v799 = vadd.f32 %v540, %v787
        %v800 = vadd.f32 %v545, %v787
        %v801 = vadd.f32 %v548, %v787
        %v802 = vadd.f32 %v553, %v787
        %v803 = vadd.f32 %v556, %v787
        %v804 = vlaneseq
        %v805 = vshrl.u32 %v804, 7
        %v806 = vsub.s32 6, %v805
        %v807 = vrot.slane %v613, %v806
        %v808 = vadd.f32 %v497, %v807
        %v809 = vadd.f32 %v500, %v807
        %v810 = vadd.f32 %v505, %v807
        %v811 = vadd.f32 %v508, %v807
        %v812 = vadd.f32 %v513, %v807
        %v813 = vadd.f32 %v516, %v807
        %v814 = vadd.f32 %v521, %v807
        %v815 = vadd.f32 %v524, %v807
        %v816 = vadd.f32 %v529, %v807
        %v817 = vadd.f32 %v532, %v807
        %v818 = vadd.f32 %v537, %v807
        %v819 = vadd.f32 %v540, %v807
        %v820 = vadd.f32 %v545, %v807
        %v821 = vadd.f32 %v548, %v807
        %v822 = vadd.f32 %v553, %v807
        %v823 = vadd.f32 %v556, %v807
        %v824 = vlaneseq
        %v825 = vshrl.u32 %v824, 7
        %v826 = vsub.s32 7, %v825
        %v827 = vrot.slane %v613, %v826
        %v828 = vadd.f32 %v497, %v827
        %v829 = vadd.f32 %v500, %v827
        %v830 = vadd.f32 %v505, %v827
        %v831 = vadd.f32 %v508, %v827
        %v832 = vadd.f32 %v513, %v827
        %v833 = vadd.f32 %v516, %v827
        %v834 = vadd.f32 %v521, %v827
        %v835 = vadd.f32 %v524, %v827
        %v836 = vadd.f32 %v529, %v827
        %v837 = vadd.f32 %v532, %v827
        %v838 = vadd.f32 %v537, %v827
        %v839 = vadd.f32 %v540, %v827
        %v840 = vadd.f32 %v545, %v827
        %v841 = vadd.f32 %v548, %v827
        %v842 = vadd.f32 %v553, %v827
        %v843 = vadd.f32 %v556, %v827
        %v844 = vtanh.pop %v688
        %v845 = vtanh.pop %v689
        %v846 = vtanh.pop %v690
        %v847 = vtanh.pop %v691
        %v848 = vtanh.pop %v692
        %v849 = vtanh.pop %v693
        %v850 = vtanh.pop %v694
        %v851 = vtanh.pop %v695
        %v852 = vtanh.pop %v696
        %v853 = vtanh.pop %v697
        %v854 = vtanh.pop %v698
        %v855 = vtanh.pop %v699
        %v856 = vtanh.pop %v700
        %v857 = vtanh.pop %v701
        %v858 = vtanh.pop %v702
        %v859 = vtanh.pop %v703
        %v860 = vtanh.pop %v708
        %v861 = vtanh.pop %v709
        %v862 = vtanh.pop %v710
        %v863 = vtanh.pop %v711
        %v864 = vtanh.pop %v712
        %v865 = vtanh.pop %v713
        %v866 = vtanh.pop %v714
        %v867 = vtanh.pop %v715
        %v868 = vtanh.pop %v716
        %v869 = vtanh.pop %v717
        %v870 = vtanh.pop %v718
        %v871 = vtanh.pop %v719
        %v872 = vtanh.pop %v720
        %v873 = vtanh.pop %v721
        %v874 = vtanh.pop %v722
        %v875 = vtanh.pop %v723
        %v876 = vtanh.pop %v728
        %v877 = vtanh.pop %v729
        %v878 = vtanh.pop %v730
        %v879 = vtanh.pop %v731
        %v880 = vtanh.pop %v732
        %v881 = vtanh.pop %v733
        %v882 = vtanh.pop %v734
        %v883 = vtanh.pop %v735
        %v884 = vtanh.pop %v736
        %v885 = vtanh.pop %v737
        %v886 = vtanh.pop %v738
        %v887 = vtanh.pop %v739
        %v888 = vtanh.pop %v740
        %v889 = vtanh.pop %v741
        %v890 = vtanh.pop %v742
        %v891 = vtanh.pop %v743
        %v892 = vtanh.pop %v748
        %v893 = vtanh.pop %v749
        %v894 = vtanh.pop %v750
        %v895 = vtanh.pop %v751
        %v896 = vtanh.pop %v752
        %v897 = vtanh.pop %v753
        %v898 = vtanh.pop %v754
        %v899 = vtanh.pop %v755
        %v900 = vtanh.pop %v756
        %v901 = vtanh.pop %v757
        %v902 = vtanh.pop %v758
        %v903 = vtanh.pop %v759
        %v904 = vtanh.pop %v760
        %v905 = vtanh.pop %v761
        %v906 = vtanh.pop %v762
        %v907 = vtanh.pop %v763
        %v908 = vtanh.pop %v768
        %v909 = vtanh.pop %v769
        %v910 = vtanh.pop %v770
        %v911 = vtanh.pop %v771
        %v912 = vtanh.pop %v772
        %v913 = vtanh.pop %v773
        %v914 = vtanh.pop %v774
        %v915 = vtanh.pop %v775
        %v916 = vtanh.pop %v776
        %v917 = vtanh.pop %v777
        %v918 = vtanh.pop %v778
        %v919 = vtanh.pop %v779
        %v920 = vtanh.pop %v780
        %v921 = vtanh.pop %v781
        %v922 = vtanh.pop %v782
        %v923 = vtanh.pop %v783
        %v924 = vtanh.pop %v788
        %v925 = vtanh.pop %v789
        %v926 = vtanh.pop %v790
        %v927 = vtanh.pop %v791
        %v928 = vtanh.pop %v792
        %v929 = vtanh.pop %v793
        %v930 = vtanh.pop %v794
        %v931 = vtanh.pop %v795
        %v932 = vtanh.pop %v796
        %v933 = vtanh.pop %v797
        %v934 = vtanh.pop %v798
        %v935 = vtanh.pop %v799
        %v936 = vtanh.pop %v800
        %v937 = vtanh.pop %v801
        %v938 = vtanh.pop %v802
        %v939 = vtanh.pop %v803
        %v940 = vtanh.pop %v808
        %v941 = vtanh.pop %v809
        %v942 = vtanh.pop %v810
        %v943 = vtanh.pop %v811
        %v944 = vtanh.pop %v812
        %v945 = vtanh.pop %v813
        %v946 = vtanh.pop %v814
        %v947 = vtanh.pop %v815
        %v948 = vtanh.pop %v816
        %v949 = vtanh.pop %v817
        %v950 = vtanh.pop %v818
        %v951 = vtanh.pop %v819
        %v952 = vtanh.pop %v820
        %v953 = vtanh.pop %v821
        %v954 = vtanh.pop %v822
        %v955 = vtanh.pop %v823
        %v956 = vtanh.pop %v828
        %v957 = vtanh.pop %v829
        %v958 = vtanh.pop %v830
        %v959 = vtanh.pop %v831
        %v960 = vtanh.pop %v832
        %v961 = vtanh.pop %v833
        %v962 = vtanh.pop %v834
        %v963 = vtanh.pop %v835
        %v964 = vtanh.pop %v836
        %v965 = vtanh.pop %v837
        %v966 = vtanh.pop %v838
        %v967 = vtanh.pop %v839
        %v968 = vtanh.pop %v840
        %v969 = vtanh.pop %v841
        %v970 = vtanh.pop %v842
        %v971 = vtanh.pop %v843
        %v972 = vpack.c.bf16 %v845, %v844
        %v973 = vpack.c.bf16 %v847, %v846
        %v974 = vpack.c.bf16 %v849, %v848
        %v975 = vpack.c.bf16 %v851, %v850
        %v976 = vpack.c.bf16 %v853, %v852
        %v977 = vpack.c.bf16 %v855, %v854
        %v978 = vpack.c.bf16 %v857, %v856
        %v979 = vpack.c.bf16 %v859, %v858
        %v980 = vpack.c.bf16 %v861, %v860
        %v981 = vpack.c.bf16 %v863, %v862
        %v982 = vpack.c.bf16 %v865, %v864
        %v983 = vpack.c.bf16 %v867, %v866
        %v984 = vpack.c.bf16 %v869, %v868
        %v985 = vpack.c.bf16 %v871, %v870
        %v986 = vpack.c.bf16 %v873, %v872
        %v987 = vpack.c.bf16 %v875, %v874
        %v988 = vpack.c.bf16 %v877, %v876
        %v989 = vpack.c.bf16 %v879, %v878
        %v990 = vpack.c.bf16 %v881, %v880
        %v991 = vpack.c.bf16 %v883, %v882
        %v992 = vpack.c.bf16 %v885, %v884
        %v993 = vpack.c.bf16 %v887, %v886
        %v994 = vpack.c.bf16 %v889, %v888
        %v995 = vpack.c.bf16 %v891, %v890
        %v996 = vpack.c.bf16 %v893, %v892
        %v997 = vpack.c.bf16 %v895, %v894
        %v998 = vpack.c.bf16 %v897, %v896
        %v999 = vpack.c.bf16 %v899, %v898
        %v1000 = vpack.c.bf16 %v901, %v900
        %v1001 = vpack.c.bf16 %v903, %v902
        %v1002 = vpack.c.bf16 %v905, %v904
        %v1003 = vpack.c.bf16 %v907, %v906
        %v1004 = vpack.c.bf16 %v909, %v908
        %v1005 = vpack.c.bf16 %v911, %v910
        %v1006 = vpack.c.bf16 %v913, %v912
        %v1007 = vpack.c.bf16 %v915, %v914
        %v1008 = vpack.c.bf16 %v917, %v916
        %v1009 = vpack.c.bf16 %v919, %v918
        %v1010 = vpack.c.bf16 %v921, %v920
        %v1011 = vpack.c.bf16 %v923, %v922
        %v1012 = vpack.c.bf16 %v925, %v924
        %v1013 = vpack.c.bf16 %v927, %v926
        %v1014 = vpack.c.bf16 %v929, %v928
        %v1015 = vpack.c.bf16 %v931, %v930
        %v1016 = vpack.c.bf16 %v933, %v932
        %v1017 = vpack.c.bf16 %v935, %v934
        %v1018 = vpack.c.bf16 %v937, %v936
        %v1019 = vpack.c.bf16 %v939, %v938
        %v1020 = vpack.c.bf16 %v941, %v940
        %v1021 = vpack.c.bf16 %v943, %v942
        %v1022 = vpack.c.bf16 %v945, %v944
        %v1023 = vpack.c.bf16 %v947, %v946
        %v1024 = vpack.c.bf16 %v949, %v948
        %v1025 = vpack.c.bf16 %v951, %v950
        %v1026 = vpack.c.bf16 %v953, %v952
        %v1027 = vpack.c.bf16 %v955, %v954
        %v1028 = vpack.c.bf16 %v957, %v956
        %v1029 = vpack.c.bf16 %v959, %v958
        %v1030 = vpack.c.bf16 %v961, %v960
        %v1031 = vpack.c.bf16 %v963, %v962
        %v1032 = vpack.c.bf16 %v965, %v964
        %v1033 = vpack.c.bf16 %v967, %v966
        %v1034 = vpack.c.bf16 %v969, %v968
        %v1035 = vpack.c.bf16 %v971, %v970
        %1037 = vset.pattern.permute.xlu0 0
        %1038 = vperm.xlu0 %1037, %v683
        %v1039 = vpop.permute.xlu0 %1038
        %v1041 = vlaneseq
        %v1042 = vshrl.u32 %v1041, 7
        %v1043 = vsub.s32 0, %v1042
        %v1044 = vrot.slane %v1039, %v1043
        %v1046 = vsel %vm437, %v682, 0
        %v1049 = vsel %vm437, %v972, 0
        %v1052 = vsel %vm437, %v973, 0
        %v1055 = vsel %vm437, %v974, 0
        %v1058 = vsel %vm437, %v975, 0
        %v1061 = vsel %vm437, %v976, 0
        %v1064 = vsel %vm437, %v977, 0
        %v1067 = vsel %vm437, %v978, 0
        %v1070 = vsel %vm437, %v979, 0
        %v1073 = vsel %vm437, %v980, 0
        %v1076 = vsel %vm437, %v981, 0
        %v1079 = vsel %vm437, %v982, 0
        %v1082 = vsel %vm437, %v983, 0
        %v1085 = vsel %vm437, %v984, 0
        %v1088 = vsel %vm437, %v985, 0
        %v1091 = vsel %vm437, %v986, 0
        %v1094 = vsel %vm437, %v987, 0
        %v1097 = vsel %vm437, %v988, 0
        %v1100 = vsel %vm437, %v989, 0
        %v1103 = vsel %vm437, %v990, 0
        %v1106 = vsel %vm437, %v991, 0
        %v1109 = vsel %vm437, %v992, 0
        %v1112 = vsel %vm437, %v993, 0
        %v1115 = vsel %vm437, %v994, 0
        %v1118 = vsel %vm437, %v995, 0
        %v1121 = vsel %vm437, %v996, 0
        %v1124 = vsel %vm437, %v997, 0
        %v1127 = vsel %vm437, %v998, 0
        %v1130 = vsel %vm437, %v999, 0
        %v1133 = vsel %vm437, %v1000, 0
        %v1136 = vsel %vm437, %v1001, 0
        %v1139 = vsel %vm437, %v1002, 0
        %v1142 = vsel %vm437, %v1003, 0
        %v1145 = vsel %vm437, %v1004, 0
        %v1148 = vsel %vm437, %v1005, 0
        %v1151 = vsel %vm437, %v1006, 0
        %v1154 = vsel %vm437, %v1007, 0
        %v1157 = vsel %vm437, %v1008, 0
        %v1160 = vsel %vm437, %v1009, 0
        %v1163 = vsel %vm437, %v1010, 0
        %v1166 = vsel %vm437, %v1011, 0
        %v1169 = vsel %vm437, %v1012, 0
        %v1172 = vsel %vm437, %v1013, 0
        %v1175 = vsel %vm437, %v1014, 0
        %v1178 = vsel %vm437, %v1015, 0
        %v1181 = vsel %vm437, %v1016, 0
        %v1184 = vsel %vm437, %v1017, 0
        %v1187 = vsel %vm437, %v1018, 0
        %v1190 = vsel %vm437, %v1019, 0
        %v1193 = vsel %vm437, %v1020, 0
        %v1196 = vsel %vm437, %v1021, 0
        %v1199 = vsel %vm437, %v1022, 0
        %v1202 = vsel %vm437, %v1023, 0
        %v1205 = vsel %vm437, %v1024, 0
        %v1208 = vsel %vm437, %v1025, 0
        %v1211 = vsel %vm437, %v1026, 0
        %v1214 = vsel %vm437, %v1027, 0
        %v1217 = vsel %vm437, %v1028, 0
        %v1220 = vsel %vm437, %v1029, 0
        %v1223 = vsel %vm437, %v1030, 0
        %v1226 = vsel %vm437, %v1031, 0
        %v1229 = vsel %vm437, %v1032, 0
        %v1232 = vsel %vm437, %v1033, 0
        %v1235 = vsel %vm437, %v1034, 0
        %v1238 = vsel %vm437, %v1035, 0
        %1240 = vmatprep.subr.bf16.mxu0 0
        %1241 = vmatpush1.bf16.xpose.msra.mxu0 %v1049
        %1242 = vmatprep.subr.bf16.mxu0 0
        %1243 = vmatpush1.bf16.xpose.msra.mxu0 %v1052
        %1244 = vmatprep.subr.bf16.mxu0 0
        %1245 = vmatpush1.bf16.xpose.msra.mxu0 %v1055
        %1246 = vmatprep.subr.bf16.mxu0 0
        %1247 = vmatpush1.bf16.xpose.msra.mxu0 %v1058
        %1248 = vmatprep.subr.bf16.mxu0 0
        %1249 = vmatpush1.bf16.xpose.msra.mxu0 %v1061
        %1250 = vmatprep.subr.bf16.mxu0 0
        %1251 = vmatpush1.bf16.xpose.msra.mxu0 %v1064
        %1252 = vmatprep.subr.bf16.mxu0 0
        %1253 = vmatpush1.bf16.xpose.msra.mxu0 %v1067
        %1254 = vmatprep.subr.bf16.mxu0 0
        %1255 = vmatpush1.bf16.xpose.msra.mxu0 %v1070
        %1256 = vmatprep.subr.bf16.mxu0 0
        %1257 = vmatpush1.bf16.xpose.msra.mxu0 %v1073
        %1258 = vmatprep.subr.bf16.mxu0 0
        %1259 = vmatpush1.bf16.xpose.msra.mxu0 %v1076
        %1260 = vmatprep.subr.bf16.mxu0 0
        %1261 = vmatpush1.bf16.xpose.msra.mxu0 %v1079
        %1262 = vmatprep.subr.bf16.mxu0 0
        %1263 = vmatpush1.bf16.xpose.msra.mxu0 %v1082
        %1264 = vmatprep.subr.bf16.mxu0 0
        %1265 = vmatpush1.bf16.xpose.msra.mxu0 %v1085
        %1266 = vmatprep.subr.bf16.mxu0 0
        %1267 = vmatpush1.bf16.xpose.msra.mxu0 %v1088
        %1268 = vmatprep.subr.bf16.mxu0 0
        %1269 = vmatpush1.bf16.xpose.msra.mxu0 %v1091
        %1270 = vmatprep.subr.bf16.mxu0 0
        %1271 = vmatpush1.bf16.xpose.msra.mxu0 %v1094
        %1272 = vmatprep.mubr.bf16.mxu0 0
        %1273 = vmatmul.mubr.bf16.gmra.mrb[0].mxu0 %v1046
        %v1274 = vpop.f32.mrb[0].mxu0
        %v1275 = vadd.f32 %v1044, %v1274
        %v1276 = vpop.f32.mrb[0].mxu0
        %v1277 = vadd.f32 %v1044, %v1276
        %v1278 = vpop.f32.mrb[0].mxu0
        %v1279 = vpop.f32.mrb[0].mxu0
        %1280 = vdwg.mxu0
        %1281 = vmatprep.subr.bf16.mxu0 0
        %1282 = vmatpush1.bf16.xpose.msra.mxu0 %v1097
        %1283 = vmatprep.subr.bf16.mxu0 0
        %1284 = vmatpush1.bf16.xpose.msra.mxu0 %v1100
        %1285 = vmatprep.subr.bf16.mxu0 0
        %1286 = vmatpush1.bf16.xpose.msra.mxu0 %v1103
        %1287 = vmatprep.subr.bf16.mxu0 0
        %1288 = vmatpush1.bf16.xpose.msra.mxu0 %v1106
        %1289 = vmatprep.subr.bf16.mxu0 0
        %1290 = vmatpush1.bf16.xpose.msra.mxu0 %v1109
        %1291 = vmatprep.subr.bf16.mxu0 0
        %1292 = vmatpush1.bf16.xpose.msra.mxu0 %v1112
        %1293 = vmatprep.subr.bf16.mxu0 0
        %1294 = vmatpush1.bf16.xpose.msra.mxu0 %v1115
        %1295 = vmatprep.subr.bf16.mxu0 0
        %1296 = vmatpush1.bf16.xpose.msra.mxu0 %v1118
        %1297 = vmatprep.subr.bf16.mxu0 0
        %1298 = vmatpush1.bf16.xpose.msra.mxu0 %v1121
        %1299 = vmatprep.subr.bf16.mxu0 0
        %1300 = vmatpush1.bf16.xpose.msra.mxu0 %v1124
        %1301 = vmatprep.subr.bf16.mxu0 0
        %1302 = vmatpush1.bf16.xpose.msra.mxu0 %v1127
        %1303 = vmatprep.subr.bf16.mxu0 0
        %1304 = vmatpush1.bf16.xpose.msra.mxu0 %v1130
        %1305 = vmatprep.subr.bf16.mxu0 0
        %1306 = vmatpush1.bf16.xpose.msra.mxu0 %v1133
        %1307 = vmatprep.subr.bf16.mxu0 0
        %1308 = vmatpush1.bf16.xpose.msra.mxu0 %v1136
        %1309 = vmatprep.subr.bf16.mxu0 0
        %1310 = vmatpush1.bf16.xpose.msra.mxu0 %v1139
        %1311 = vmatprep.subr.bf16.mxu0 0
        %1312 = vmatpush1.bf16.xpose.msra.mxu0 %v1142
        %1313 = vmatprep.mubr.bf16.mxu0 0
        %1314 = vmatmul.mubr.bf16.gmra.mrb[0].mxu0 %v1046
        %v1315 = vpop.f32.mrb[0].mxu0
        %v1316 = vadd.f32 %v1044, %v1315
        %v1317 = vpop.f32.mrb[0].mxu0
        %v1318 = vadd.f32 %v1044, %v1317
        %v1319 = vpop.f32.mrb[0].mxu0
        %v1320 = vpop.f32.mrb[0].mxu0
        %1321 = vdwg.mxu0
        %1322 = vmatprep.subr.bf16.mxu0 0
        %1323 = vmatpush1.bf16.xpose.msra.mxu0 %v1145
        %1324 = vmatprep.subr.bf16.mxu0 0
        %1325 = vmatpush1.bf16.xpose.msra.mxu0 %v1148
        %1326 = vmatprep.subr.bf16.mxu0 0
        %1327 = vmatpush1.bf16.xpose.msra.mxu0 %v1151
        %1328 = vmatprep.subr.bf16.mxu0 0
        %1329 = vmatpush1.bf16.xpose.msra.mxu0 %v1154
        %1330 = vmatprep.subr.bf16.mxu0 0
        %1331 = vmatpush1.bf16.xpose.msra.mxu0 %v1157
        %1332 = vmatprep.subr.bf16.mxu0 0
        %1333 = vmatpush1.bf16.xpose.msra.mxu0 %v1160
        %1334 = vmatprep.subr.bf16.mxu0 0
        %1335 = vmatpush1.bf16.xpose.msra.mxu0 %v1163
        %1336 = vmatprep.subr.bf16.mxu0 0
        %1337 = vmatpush1.bf16.xpose.msra.mxu0 %v1166
        %1338 = vmatprep.subr.bf16.mxu0 0
        %1339 = vmatpush1.bf16.xpose.msra.mxu0 %v1169
        %1340 = vmatprep.subr.bf16.mxu0 0
        %1341 = vmatpush1.bf16.xpose.msra.mxu0 %v1172
        %1342 = vmatprep.subr.bf16.mxu0 0
        %1343 = vmatpush1.bf16.xpose.msra.mxu0 %v1175
        %1344 = vmatprep.subr.bf16.mxu0 0
        %1345 = vmatpush1.bf16.xpose.msra.mxu0 %v1178
        %1346 = vmatprep.subr.bf16.mxu0 0
        %1347 = vmatpush1.bf16.xpose.msra.mxu0 %v1181
        %1348 = vmatprep.subr.bf16.mxu0 0
        %1349 = vmatpush1.bf16.xpose.msra.mxu0 %v1184
        %1350 = vmatprep.subr.bf16.mxu0 0
        %1351 = vmatpush1.bf16.xpose.msra.mxu0 %v1187
        %1352 = vmatprep.subr.bf16.mxu0 0
        %1353 = vmatpush1.bf16.xpose.msra.mxu0 %v1190
        %1354 = vmatprep.mubr.bf16.mxu0 0
        %1355 = vmatmul.mubr.bf16.gmra.mrb[0].mxu0 %v1046
        %v1356 = vpop.f32.mrb[0].mxu0
        %v1357 = vadd.f32 %v1044, %v1356
        %v1358 = vpop.f32.mrb[0].mxu0
        %v1359 = vadd.f32 %v1044, %v1358
        %v1360 = vpop.f32.mrb[0].mxu0
        %v1361 = vpop.f32.mrb[0].mxu0
        %1362 = vdwg.mxu0
        %1363 = vmatprep.subr.bf16.mxu0 0
        %1364 = vmatpush1.bf16.xpose.msra.mxu0 %v1193
        %1365 = vmatprep.subr.bf16.mxu0 0
        %1366 = vmatpush1.bf16.xpose.msra.mxu0 %v1196
        %1367 = vmatprep.subr.bf16.mxu0 0
        %1368 = vmatpush1.bf16.xpose.msra.mxu0 %v1199
        %1369 = vmatprep.subr.bf16.mxu0 0
        %1370 = vmatpush1.bf16.xpose.msra.mxu0 %v1202
        %1371 = vmatprep.subr.bf16.mxu0 0
        %1372 = vmatpush1.bf16.xpose.msra.mxu0 %v1205
        %1373 = vmatprep.subr.bf16.mxu0 0
        %1374 = vmatpush1.bf16.xpose.msra.mxu0 %v1208
        %1375 = vmatprep.subr.bf16.mxu0 0
        %1376 = vmatpush1.bf16.xpose.msra.mxu0 %v1211
        %1377 = vmatprep.subr.bf16.mxu0 0
        %1378 = vmatpush1.bf16.xpose.msra.mxu0 %v1214
        %1379 = vmatprep.subr.bf16.mxu0 0
        %1380 = vmatpush1.bf16.xpose.msra.mxu0 %v1217
        %1381 = vmatprep.subr.bf16.mxu0 0
        %1382 = vmatpush1.bf16.xpose.msra.mxu0 %v1220
        %1383 = vmatprep.subr.bf16.mxu0 0
        %1384 = vmatpush1.bf16.xpose.msra.mxu0 %v1223
        %1385 = vmatprep.subr.bf16.mxu0 0
        %1386 = vmatpush1.bf16.xpose.msra.mxu0 %v1226
        %1387 = vmatprep.subr.bf16.mxu0 0
        %1388 = vmatpush1.bf16.xpose.msra.mxu0 %v1229
        %1389 = vmatprep.subr.bf16.mxu0 0
        %1390 = vmatpush1.bf16.xpose.msra.mxu0 %v1232
        %1391 = vmatprep.subr.bf16.mxu0 0
        %1392 = vmatpush1.bf16.xpose.msra.mxu0 %v1235
        %1393 = vmatprep.subr.bf16.mxu0 0
        %1394 = vmatpush1.bf16.xpose.msra.mxu0 %v1238
        %1395 = vmatprep.mubr.bf16.mxu0 0
        %1396 = vmatmul.mubr.bf16.gmra.mrb[0].mxu0 %v1046
        %v1397 = vpop.f32.mrb[0].mxu0
        %v1398 = vadd.f32 %v1044, %v1397
        %v1399 = vpop.f32.mrb[0].mxu0
        %v1400 = vadd.f32 %v1044, %v1399
        %v1401 = vpop.f32.mrb[0].mxu0
        %v1402 = vpop.f32.mrb[0].mxu0
        %1403 = vdwg.mxu0
        %v1412 = vcombine.low %v1275, %v1277
        %v1413 = vcombine.low %v1316, %v1318
        %v1414 = vcombine.low %v1357, %v1359
        %v1415 = vcombine.low %v1398, %v1400
        %v1417 = vunpack.c.l.s4 1966171168
        %v1418 = vunpack.c.0.s8 %v1417
        %v1419 = vlaneseq
        %v1420 = vshrl.u32 %v1419, 7
        %v1421 = vsub.s32 %v1418, %v1420
        %v1422 = vrot.slane %v1412, %v1421
        %v1424 = vunpack.c.l.s4 1966171168
        %v1425 = vunpack.c.0.s8 %v1424
        %v1426 = vlaneseq
        %v1427 = vshrl.u32 %v1426, 7
        %v1428 = vsub.s32 %v1425, %v1427
        %v1429 = vrot.slane %v1413, %v1428
        %v1431 = vunpack.c.l.s4 1966171168
        %v1432 = vunpack.c.0.s8 %v1431
        %v1433 = vlaneseq
        %v1434 = vshrl.u32 %v1433, 7
        %v1435 = vsub.s32 %v1432, %v1434
        %v1436 = vrot.slane %v1414, %v1435
        %v1438 = vunpack.c.l.s4 1966171168
        %v1439 = vunpack.c.0.s8 %v1438
        %v1440 = vlaneseq
        %v1441 = vshrl.u32 %v1440, 7
        %v1442 = vsub.s32 %v1439, %v1441
        %v1443 = vrot.slane %v1415, %v1442
        %v1444 = vcombine.low %v1422, %v1429
        %v1445 = vcombine.low %v1436, %v1443
        %v1447 = vunpack.c.l.s4 1966171168
        %v1448 = vunpack.c.0.s8 %v1447
        %v1449 = vlaneseq
        %v1450 = vshrl.u32 %v1449, 7
        %v1451 = vsub.s32 %v1448, %v1450
        %v1452 = vrot.slane %v1444, %v1451
        %v1454 = vunpack.c.l.s4 1966171168
        %v1455 = vunpack.c.0.s8 %v1454
        %v1456 = vlaneseq
        %v1457 = vshrl.u32 %v1456, 7
        %v1458 = vsub.s32 %v1455, %v1457
        %v1459 = vrot.slane %v1445, %v1458
        %v1460 = vcombine.low %v1452, %v1459
        %1462 = vst [vmem:[%s345] sm:$0xff] %v1460
        %s1463 = sand.u32 %s215, 1
        %s1464 = scalar_lea.sflag [#allocation4], %s1463
        %s1465 = sand.u32 %s215, 1
        %s1466 = smul.addr %s1465, 8
        %s1467 = scalar_lea.vmem [#allocation3], %s1466
        %s1468 = sand.u32 %s241, 1
        %s1469 = scalar_lea.sflag [#allocation6], %s1468
        %s1470 = sand.u32 %s241, 1
        %s1471 = smul.addr %s1470, 8
        %s1472 = scalar_lea.vmem [#allocation5], %s1471
        // Predicated region
        $region53: #{tpu_custom_call.1} parent=51 // pred_check
          %p1473 = pneg %p225
        $region54: #{tpu_custom_call.1} parent=51 // pred_check_branch
          %1475 = sbr.rel (%p1473) target = $region56
        $region55: #{tpu_custom_call.1} parent=51 // pred_region
          %s1477 = ssub.s32 128, 128
          %1478 = vsyncadd %s1464, %s1477
          %s1479 = smul.addr %s29, 8
          %s1480 = smul.addr %s1479, 16
          %s1481 = scalar_lea.hbm %s8, %s1480
          %s1483 = sshll.u32 %s1467, 4
          %s1484 = int_to_ptr.vmem [resolvable:$true] %s1483
          %1486 = dma.vmem_to_hbm [thread:$0]  %s1484, 128, %s1481, %s1464
        $region56: #{tpu_custom_call.1} parent=51 // pred_fallthru
          _
        // Predicated region
        $region57: #{tpu_custom_call.1} parent=51 // pred_check
          %p1487 = pneg %p251
        $region58: #{tpu_custom_call.1} parent=51 // pred_check_branch
          %1489 = sbr.rel (%p1487) target = $region60
        $region59: #{tpu_custom_call.1} parent=51 // pred_region
          %s1491 = ssub.s32 128, 128
          %1492 = vsyncadd %s1469, %s1491
          %s1493 = smul.addr %s29, 128
          %s1494 = scalar_lea.hbm %s9, %s1493
          %s1496 = sshll.u32 %s1472, 4
          %s1497 = int_to_ptr.vmem [resolvable:$true] %s1496
          %1499 = dma.vmem_to_hbm [thread:$0]  %s1497, 128, %s1494, %s1469
        $region60: #{tpu_custom_call.1} parent=51 // pred_fallthru
          _
      $region52: #{tpu_custom_call.1} parent=5 // pred_fallthru
        _
      %p1500 = scmp.le.s32.totalorder 2, %s24
      // Predicated region
      $region61: #{tpu_custom_call.1} parent=5 // pred_check
        %p1501 = pneg %p1500
      $region62: #{tpu_custom_call.1} parent=5 // pred_check_branch
        %1503 = sbr.rel (%p1501) target = $region64
      $region63: #{tpu_custom_call.1} parent=5 // pred_region
        %s1504 = ssub.s32 %s24, 2
        // Predicated region
        $region65: #{tpu_custom_call.1} parent=63 // pred_check
          %p1505 = pneg %p231
        $region66: #{tpu_custom_call.1} parent=63 // pred_check_branch
          %1507 = sbr.rel (%p1505) target = $region68
        $region67: #{tpu_custom_call.1} parent=63 // pred_region
          %s1508 = sand.u32 %s216, 1
          %s1509 = scalar_lea.sflag [#allocation4], %s1508
          %s1510 = sand.u32 %s216, 1
          %s1511 = smul.addr %s1510, 8
          %s1512 = scalar_lea.vmem [#allocation3], %s1511
          %1513 = dma.done %s1509, 128
        $region68: #{tpu_custom_call.1} parent=63 // pred_fallthru
          _
        // Predicated region
        $region69: #{tpu_custom_call.1} parent=63 // pred_check
          %p1514 = pneg %p257
        $region70: #{tpu_custom_call.1} parent=63 // pred_check_branch
          %1516 = sbr.rel (%p1514) target = $region72
        $region71: #{tpu_custom_call.1} parent=63 // pred_region
          %s1517 = sand.u32 %s242, 1
          %s1518 = scalar_lea.sflag [#allocation6], %s1517
          %s1519 = sand.u32 %s242, 1
          %s1520 = smul.addr %s1519, 8
          %s1521 = scalar_lea.vmem [#allocation5], %s1520
          %1522 = dma.done %s1518, 128
        $region72: #{tpu_custom_call.1} parent=63 // pred_fallthru
          _
      $region64: #{tpu_custom_call.1} parent=5 // pred_fallthru
        _
    $region6: #{tpu_custom_call.1} parent=1 // loop_footer
      %s28 = sadd.s32 1, %s24
    $region7: #{tpu_custom_call.1} parent=1 // loop_footer_branch
      %23 = sbr.rel target = $region3
    $region8: #{tpu_custom_call.1} parent=1 // loop_exit
      _
    %1523 = vsyncpa [#allocation4], 1
    %s1524 = scalar_lea.sflag [#allocation4], 1
    %1525 = vsyncpa %s1524, 1
    %1526 = vsyncpa [#allocation6], 1
    %s1527 = scalar_lea.sflag [#allocation6], 1
    %1528 = vsyncpa %s1527, 1

</llo_original>
